<compile_context>
chip_gen: v5e
topology: v5e:2x2
jax: 0.10.0
libtpu: 0.0.40
codegen_flags: <defaults>
</compile_context>

<pallas_src>
import functools

import jax
import jax.numpy as jnp
from jax import lax
from jax.experimental import pallas as pl
from jax.experimental.pallas import tpu as pltpu


def _basic_block_kernel(x_ref, w1_ref, w2_ref, b1_ref, b2_ref, mask_ref,
                        out_ref, xpf_ref, y1p_ref, p_ref, *, H, W):
    # x_ref:   (1, C, H*W)  f32 (dense, NCHW-flat)
    # w*_ref:  (C, 9*C)     bf16 (BN scale folded in, (kh,kw,cin) column order)
    # b*_ref:  (C, 1)       f32 folded BN bias
    # mask_ref:(1, H*Wp)    f32, 0 at the two junk columns of each strip row
    # xpf_ref: (C, PAD_LEN) f32 scratch  -- zero-padded x, row-flattened "strip"
    # y1p_ref: (C, PAD_LEN) bf16 scratch -- zero-padded y1, same layout
    # p_ref:   (9*C, H*Wp)  bf16 scratch -- im2col matrix
    C = x_ref.shape[1]
    Wp = W + 2
    L = H * Wp                      # strip length: H rows of Wp columns

    # -------- in-kernel zero padding of x (no wrapper jnp.pad) --------
    # xpf[c, a*Wp + b] = xpad[c, a, b] with a 1-pixel zero border; kept in f32
    # so the same buffer doubles as the exact identity term for the residual.
    xpf_ref[...] = jnp.zeros_like(xpf_ref)
    for h in range(H):
        xpf_ref[:, (h + 1) * Wp + 1:(h + 1) * Wp + 1 + W] = \
            x_ref[0, :, h * W:(h + 1) * W].astype(jnp.float32)

    b1 = b1_ref[...]                # (C, 1)
    b2 = b2_ref[...]
    mask = mask_ref[...]            # (1, L)

    def im2col(src_ref):
        # P[(kh*3+kw)*C + c, j] = src[c, j + kh*Wp + kw]
        # -> one (C, 9C) @ (9C, L) MXU matmul per conv (K = 9*Cin).
        for kh in range(3):
            for kw in range(3):
                tap = kh * 3 + kw
                off = kh * Wp + kw
                p_ref[tap * C:(tap + 1) * C, :] = \
                    src_ref[:, off:off + L].astype(jnp.bfloat16)

    # ---------------- conv1 + bn1 + relu ----------------
    im2col(xpf_ref)
    s1 = jnp.dot(w1_ref[...], p_ref[...], preferred_element_type=jnp.float32)
    y1 = jnp.maximum(s1 + b1, 0.0) * mask           # (C, L); junk cols -> 0

    # y1 (strip coords) -> zero-padded scratch for conv2; stays in VMEM.
    y1p_ref[...] = jnp.zeros_like(y1p_ref)
    y1p_ref[:, Wp + 1:Wp + 1 + L] = y1.astype(y1p_ref.dtype)

    # ---------------- conv2 + bn2 + residual + relu ----------------
    im2col(y1p_ref)
    s2 = jnp.dot(w2_ref[...], p_ref[...], preferred_element_type=jnp.float32)
    ident = xpf_ref[:, Wp + 1:Wp + 1 + L]           # == x (f32) in strip coords
    res = jnp.maximum(s2 + b2 + ident, 0.0)         # (C, L)

    # strip -> dense rows (drop the 2 pad columns per row) and store.
    for h in range(H):
        out_ref[:, :, h * W:(h + 1) * W] = \
            res[None, :, h * Wp:h * Wp + W].astype(out_ref.dtype)


def _fold_bn(gamma, beta, mean, var, eps=1e-5):
    scale = gamma / jnp.sqrt(var + eps)
    bias = beta - mean * scale
    return scale, bias


def _fold_weight(w_oihw, scale):
    # Fold the BN scale into the conv weight and lay it out as (Cout, 9*Cin)
    # with column order (kh, kw, cin), matching the in-kernel im2col.
    w = w_oihw * scale[:, None, None, None]
    cout, cin = w.shape[0], w.shape[1]
    return jnp.transpose(w, (0, 2, 3, 1)).reshape(cout, 9 * cin).astype(jnp.bfloat16)


def basic_block_forward(x_nchw, params):
    """BasicBlock.forward (stride=1, downsample=None), BatchNorm in eval mode."""
    N, C, H, W = x_nchw.shape
    Wp = W + 2
    L = H * Wp
    PAD_LEN = (H + 2) * Wp + 2      # +2 keeps the last im2col tap slice in bounds

    s1, b1 = _fold_bn(params["bn1_gamma"], params["bn1_beta"],
                      params["bn1_mean"], params["bn1_var"])
    s2, b2 = _fold_bn(params["bn2_gamma"], params["bn2_beta"],
                      params["bn2_mean"], params["bn2_var"])
    w1m = _fold_weight(params["conv1_w"], s1)       # (C, 9C) bf16
    w2m = _fold_weight(params["conv2_w"], s2)       # (C, 9C) bf16

    x_flat = x_nchw.reshape(N, C, H * W)            # free reshape, lane-dense
    mask = (jnp.arange(L) % Wp < W).astype(jnp.float32).reshape(1, L)

    kernel = functools.partial(_basic_block_kernel, H=H, W=W)
    out_flat = pl.pallas_call(
        kernel,
        out_shape=jax.ShapeDtypeStruct((N, C, H * W), x_nchw.dtype),
        grid_spec=pltpu.PrefetchScalarGridSpec(
            num_scalar_prefetch=0,
            grid=(N,),
            in_specs=[
                pl.BlockSpec((1, C, H * W), lambda n: (n, 0, 0)),  # x
                pl.BlockSpec((C, 9 * C), lambda n: (0, 0)),        # w1 (folded)
                pl.BlockSpec((C, 9 * C), lambda n: (0, 0)),        # w2 (folded)
                pl.BlockSpec((C, 1), lambda n: (0, 0)),            # b1
                pl.BlockSpec((C, 1), lambda n: (0, 0)),            # b2
                pl.BlockSpec((1, L), lambda n: (0, 0)),            # junk-col mask
            ],
            out_specs=pl.BlockSpec((1, C, H * W), lambda n: (n, 0, 0)),
            scratch_shapes=[
                pltpu.VMEM((C, PAD_LEN), jnp.float32),    # padded x (strip)
                pltpu.VMEM((C, PAD_LEN), jnp.bfloat16),   # padded y1 (strip)
                pltpu.VMEM((9 * C, L), jnp.bfloat16),     # im2col matrix
            ],
        ),
        compiler_params=pltpu.CompilerParams(
            dimension_semantics=("parallel",),
            vmem_limit_bytes=32 * 1024 * 1024,
        ),
    )(x_flat, w1m, w2m, b1.reshape(C, 1), b2.reshape(C, 1), mask)

    return out_flat.reshape(N, C, H, W)


def _reference_forward(x_nchw, params):
    """Pure-JAX reference (lax.conv) for correctness checking."""
    dn = ("NCHW", "OIHW", "NCHW")
    s1, b1 = _fold_bn(params["bn1_gamma"], params["bn1_beta"],
                      params["bn1_mean"], params["bn1_var"])
    s2, b2 = _fold_bn(params["bn2_gamma"], params["bn2_beta"],
                      params["bn2_mean"], params["bn2_var"])
    y = lax.conv_general_dilated(x_nchw, params["conv1_w"], (1, 1),
                                 ((1, 1), (1, 1)), dimension_numbers=dn)
    y = y * s1[None, :, None, None] + b1[None, :, None, None]
    y = jnp.maximum(y, 0.0)
    y = lax.conv_general_dilated(y, params["conv2_w"], (1, 1),
                                 ((1, 1), (1, 1)), dimension_numbers=dn)
    y = y * s2[None, :, None, None] + b2[None, :, None, None]
    y = y + x_nchw
    return jnp.maximum(y, 0.0)


if __name__ == "__main__":
    key = jax.random.PRNGKey(0)
    ks = jax.random.split(key, 12)

    N, C, H, W = 2, 4, 16, 16          # inplanes = planes = 4, stride = 1
    x = jax.random.normal(ks[0], (N, C, H, W), jnp.float32)

    params = {
        "conv1_w": 0.1 * jax.random.normal(ks[1], (C, C, 3, 3), jnp.float32),
        "conv2_w": 0.1 * jax.random.normal(ks[2], (C, C, 3, 3), jnp.float32),
        "bn1_gamma": jax.random.uniform(ks[3], (C,), jnp.float32, 0.5, 1.5),
        "bn1_beta": 0.1 * jax.random.normal(ks[4], (C,), jnp.float32),
        "bn1_mean": 0.1 * jax.random.normal(ks[5], (C,), jnp.float32),
        "bn1_var": jax.random.uniform(ks[6], (C,), jnp.float32, 0.5, 1.5),
        "bn2_gamma": jax.random.uniform(ks[7], (C,), jnp.float32, 0.5, 1.5),
        "bn2_beta": 0.1 * jax.random.normal(ks[8], (C,), jnp.float32),
        "bn2_mean": 0.1 * jax.random.normal(ks[9], (C,), jnp.float32),
        "bn2_var": jax.random.uniform(ks[10], (C,), jnp.float32, 0.5, 1.5),
    }

    out = jax.block_until_ready(basic_block_forward(x, params))
    ref = jax.block_until_ready(_reference_forward(x, params))

    assert out.shape == (N, C, H, W), out.shape
    err = float(jnp.max(jnp.abs(out - ref)))
    # bf16 MXU inputs (f32 accumulation) -> loosened tolerance vs the f32 reference.
    assert jnp.allclose(out, ref, rtol=2e-2, atol=2e-2), f"max abs err = {err}"
    print("KERNEL_OK")
</pallas_src>

<mosaic_0001>
module attributes {stable_mosaic.version = 11 : i64} {
  func.func @_basic_block_kernel(%arg0: i32, %arg1: memref<1x4x256xf32, #tpu.memory_space<vmem>>, %arg2: memref<4x36xbf16, #tpu.memory_space<vmem>>, %arg3: memref<4x36xbf16, #tpu.memory_space<vmem>>, %arg4: memref<4x1xf32, #tpu.memory_space<vmem>>, %arg5: memref<4x1xf32, #tpu.memory_space<vmem>>, %arg6: memref<1x288xf32, #tpu.memory_space<vmem>>, %arg7: memref<1x4x256xf32, #tpu.memory_space<vmem>>, %arg8: memref<4x326xf32, #tpu.memory_space<vmem>>, %arg9: memref<4x326xbf16, #tpu.memory_space<vmem>>, %arg10: memref<36x288xbf16, #tpu.memory_space<vmem>>) attributes {dimension_semantics = [#tpu.dimension_semantics<parallel>], iteration_bounds = array<i64: 2>, scalar_prefetch = 0 : i64, scratch_operands = 3 : i64, tpu.core_type = #tpu.core_type<tc>, window_params = [{transform_indices = @transform_0, window_bounds = array<i64: 1, 4, 256>}, {pipeline_mode = #tpu.pipeline_mode<synchronous>, transform_indices = @transform_1, window_bounds = array<i64: 4, 36>}, {pipeline_mode = #tpu.pipeline_mode<synchronous>, transform_indices = @transform_2, window_bounds = array<i64: 4, 36>}, {pipeline_mode = #tpu.pipeline_mode<synchronous>, transform_indices = @transform_3, window_bounds = array<i64: 4, 1>}, {pipeline_mode = #tpu.pipeline_mode<synchronous>, transform_indices = @transform_4, window_bounds = array<i64: 4, 1>}, {pipeline_mode = #tpu.pipeline_mode<synchronous>, transform_indices = @transform_5, window_bounds = array<i64: 1, 288>}, {transform_indices = @transform_6, window_bounds = array<i64: 1, 4, 256>}]} {
    %cst = arith.constant 0.000000e+00 : f32
    %0 = vector.broadcast %cst : f32 to vector<4x326xf32>
    %c0 = arith.constant 0 : index
    %c0_0 = arith.constant 0 : index
    %1 = vector.load %arg8[%c0, %c0_0] : memref<4x326xf32, #tpu.memory_space<vmem>>, vector<4x326xf32>
    tpu.vector_store %arg8[%c0, %c0_0], %0 {strides = array<i32>} : memref<4x326xf32, #tpu.memory_space<vmem>>, vector<4x326xf32>,
    %c0_1 = arith.constant 0 : index
    %c0_2 = arith.constant 0 : index
    %c0_3 = arith.constant 0 : index
    %2 = vector.load %arg1[%c0_1, %c0_2, %c0_3] : memref<1x4x256xf32, #tpu.memory_space<vmem>>, vector<1x4x16xf32>
    %3 = vector.shape_cast %2 : vector<1x4x16xf32> to vector<4x16xf32>
    %c0_4 = arith.constant 0 : index
    %c19 = arith.constant 19 : index
    %4 = vector.load %arg8[%c0_4, %c19] : memref<4x326xf32, #tpu.memory_space<vmem>>, vector<4x16xf32>
    tpu.vector_store %arg8[%c0_4, %c19], %3 {strides = array<i32>} : memref<4x326xf32, #tpu.memory_space<vmem>>, vector<4x16xf32>,
    %c0_5 = arith.constant 0 : index
    %c0_6 = arith.constant 0 : index
    %c16 = arith.constant 16 : index
    %5 = vector.load %arg1[%c0_5, %c0_6, %c16] : memref<1x4x256xf32, #tpu.memory_space<vmem>>, vector<1x4x16xf32>
    %6 = vector.shape_cast %5 : vector<1x4x16xf32> to vector<4x16xf32>
    %c0_7 = arith.constant 0 : index
    %c37 = arith.constant 37 : index
    %7 = vector.load %arg8[%c0_7, %c37] : memref<4x326xf32, #tpu.memory_space<vmem>>, vector<4x16xf32>
    tpu.vector_store %arg8[%c0_7, %c37], %6 {strides = array<i32>} : memref<4x326xf32, #tpu.memory_space<vmem>>, vector<4x16xf32>,
    %c0_8 = arith.constant 0 : index
    %c0_9 = arith.constant 0 : index
    %c32 = arith.constant 32 : index
    %8 = vector.load %arg1[%c0_8, %c0_9, %c32] : memref<1x4x256xf32, #tpu.memory_space<vmem>>, vector<1x4x16xf32>
    %9 = vector.shape_cast %8 : vector<1x4x16xf32> to vector<4x16xf32>
    %c0_10 = arith.constant 0 : index
    %c55 = arith.constant 55 : index
    %10 = vector.load %arg8[%c0_10, %c55] : memref<4x326xf32, #tpu.memory_space<vmem>>, vector<4x16xf32>
    tpu.vector_store %arg8[%c0_10, %c55], %9 {strides = array<i32>} : memref<4x326xf32, #tpu.memory_space<vmem>>, vector<4x16xf32>,
    %c0_11 = arith.constant 0 : index
    %c0_12 = arith.constant 0 : index
    %c48 = arith.constant 48 : index
    %11 = vector.load %arg1[%c0_11, %c0_12, %c48] : memref<1x4x256xf32, #tpu.memory_space<vmem>>, vector<1x4x16xf32>
    %12 = vector.shape_cast %11 : vector<1x4x16xf32> to vector<4x16xf32>
    %c0_13 = arith.constant 0 : index
    %c73 = arith.constant 73 : index
    %13 = vector.load %arg8[%c0_13, %c73] : memref<4x326xf32, #tpu.memory_space<vmem>>, vector<4x16xf32>
    tpu.vector_store %arg8[%c0_13, %c73], %12 {strides = array<i32>} : memref<4x326xf32, #tpu.memory_space<vmem>>, vector<4x16xf32>,
    %c0_14 = arith.constant 0 : index
    %c0_15 = arith.constant 0 : index
    %c64 = arith.constant 64 : index
    %14 = vector.load %arg1[%c0_14, %c0_15, %c64] : memref<1x4x256xf32, #tpu.memory_space<vmem>>, vector<1x4x16xf32>
    %15 = vector.shape_cast %14 : vector<1x4x16xf32> to vector<4x16xf32>
    %c0_16 = arith.constant 0 : index
    %c91 = arith.constant 91 : index
    %16 = vector.load %arg8[%c0_16, %c91] : memref<4x326xf32, #tpu.memory_space<vmem>>, vector<4x16xf32>
    tpu.vector_store %arg8[%c0_16, %c91], %15 {strides = array<i32>} : memref<4x326xf32, #tpu.memory_space<vmem>>, vector<4x16xf32>,
    %c0_17 = arith.constant 0 : index
    %c0_18 = arith.constant 0 : index
    %c80 = arith.constant 80 : index
    %17 = vector.load %arg1[%c0_17, %c0_18, %c80] : memref<1x4x256xf32, #tpu.memory_space<vmem>>, vector<1x4x16xf32>
    %18 = vector.shape_cast %17 : vector<1x4x16xf32> to vector<4x16xf32>
    %c0_19 = arith.constant 0 : index
    %c109 = arith.constant 109 : index
    %19 = vector.load %arg8[%c0_19, %c109] : memref<4x326xf32, #tpu.memory_space<vmem>>, vector<4x16xf32>
    tpu.vector_store %arg8[%c0_19, %c109], %18 {strides = array<i32>} : memref<4x326xf32, #tpu.memory_space<vmem>>, vector<4x16xf32>,
    %c0_20 = arith.constant 0 : index
    %c0_21 = arith.constant 0 : index
    %c96 = arith.constant 96 : index
    %20 = vector.load %arg1[%c0_20, %c0_21, %c96] : memref<1x4x256xf32, #tpu.memory_space<vmem>>, vector<1x4x16xf32>
    %21 = vector.shape_cast %20 : vector<1x4x16xf32> to vector<4x16xf32>
    %c0_22 = arith.constant 0 : index
    %c127 = arith.constant 127 : index
    %22 = vector.load %arg8[%c0_22, %c127] : memref<4x326xf32, #tpu.memory_space<vmem>>, vector<4x16xf32>
    tpu.vector_store %arg8[%c0_22, %c127], %21 {strides = array<i32>} : memref<4x326xf32, #tpu.memory_space<vmem>>, vector<4x16xf32>,
    %c0_23 = arith.constant 0 : index
    %c0_24 = arith.constant 0 : index
    %c112 = arith.constant 112 : index
    %23 = vector.load %arg1[%c0_23, %c0_24, %c112] : memref<1x4x256xf32, #tpu.memory_space<vmem>>, vector<1x4x16xf32>
    %24 = vector.shape_cast %23 : vector<1x4x16xf32> to vector<4x16xf32>
    %c0_25 = arith.constant 0 : index
    %c145 = arith.constant 145 : index
    %25 = vector.load %arg8[%c0_25, %c145] : memref<4x326xf32, #tpu.memory_space<vmem>>, vector<4x16xf32>
    tpu.vector_store %arg8[%c0_25, %c145], %24 {strides = array<i32>} : memref<4x326xf32, #tpu.memory_space<vmem>>, vector<4x16xf32>,
    %c0_26 = arith.constant 0 : index
    %c0_27 = arith.constant 0 : index
    %c128 = arith.constant 128 : index
    %26 = vector.load %arg1[%c0_26, %c0_27, %c128] : memref<1x4x256xf32, #tpu.memory_space<vmem>>, vector<1x4x16xf32>
    %27 = vector.shape_cast %26 : vector<1x4x16xf32> to vector<4x16xf32>
    %c0_28 = arith.constant 0 : index
    %c163 = arith.constant 163 : index
    %28 = vector.load %arg8[%c0_28, %c163] : memref<4x326xf32, #tpu.memory_space<vmem>>, vector<4x16xf32>
    tpu.vector_store %arg8[%c0_28, %c163], %27 {strides = array<i32>} : memref<4x326xf32, #tpu.memory_space<vmem>>, vector<4x16xf32>,
    %c0_29 = arith.constant 0 : index
    %c0_30 = arith.constant 0 : index
    %c144 = arith.constant 144 : index
    %29 = vector.load %arg1[%c0_29, %c0_30, %c144] : memref<1x4x256xf32, #tpu.memory_space<vmem>>, vector<1x4x16xf32>
    %30 = vector.shape_cast %29 : vector<1x4x16xf32> to vector<4x16xf32>
    %c0_31 = arith.constant 0 : index
    %c181 = arith.constant 181 : index
    %31 = vector.load %arg8[%c0_31, %c181] : memref<4x326xf32, #tpu.memory_space<vmem>>, vector<4x16xf32>
    tpu.vector_store %arg8[%c0_31, %c181], %30 {strides = array<i32>} : memref<4x326xf32, #tpu.memory_space<vmem>>, vector<4x16xf32>,
    %c0_32 = arith.constant 0 : index
    %c0_33 = arith.constant 0 : index
    %c160 = arith.constant 160 : index
    %32 = vector.load %arg1[%c0_32, %c0_33, %c160] : memref<1x4x256xf32, #tpu.memory_space<vmem>>, vector<1x4x16xf32>
    %33 = vector.shape_cast %32 : vector<1x4x16xf32> to vector<4x16xf32>
    %c0_34 = arith.constant 0 : index
    %c199 = arith.constant 199 : index
    %34 = vector.load %arg8[%c0_34, %c199] : memref<4x326xf32, #tpu.memory_space<vmem>>, vector<4x16xf32>
    tpu.vector_store %arg8[%c0_34, %c199], %33 {strides = array<i32>} : memref<4x326xf32, #tpu.memory_space<vmem>>, vector<4x16xf32>,
    %c0_35 = arith.constant 0 : index
    %c0_36 = arith.constant 0 : index
    %c176 = arith.constant 176 : index
    %35 = vector.load %arg1[%c0_35, %c0_36, %c176] : memref<1x4x256xf32, #tpu.memory_space<vmem>>, vector<1x4x16xf32>
    %36 = vector.shape_cast %35 : vector<1x4x16xf32> to vector<4x16xf32>
    %c0_37 = arith.constant 0 : index
    %c217 = arith.constant 217 : index
    %37 = vector.load %arg8[%c0_37, %c217] : memref<4x326xf32, #tpu.memory_space<vmem>>, vector<4x16xf32>
    tpu.vector_store %arg8[%c0_37, %c217], %36 {strides = array<i32>} : memref<4x326xf32, #tpu.memory_space<vmem>>, vector<4x16xf32>,
    %c0_38 = arith.constant 0 : index
    %c0_39 = arith.constant 0 : index
    %c192 = arith.constant 192 : index
    %38 = vector.load %arg1[%c0_38, %c0_39, %c192] : memref<1x4x256xf32, #tpu.memory_space<vmem>>, vector<1x4x16xf32>
    %39 = vector.shape_cast %38 : vector<1x4x16xf32> to vector<4x16xf32>
    %c0_40 = arith.constant 0 : index
    %c235 = arith.constant 235 : index
    %40 = vector.load %arg8[%c0_40, %c235] : memref<4x326xf32, #tpu.memory_space<vmem>>, vector<4x16xf32>
    tpu.vector_store %arg8[%c0_40, %c235], %39 {strides = array<i32>} : memref<4x326xf32, #tpu.memory_space<vmem>>, vector<4x16xf32>,
    %c0_41 = arith.constant 0 : index
    %c0_42 = arith.constant 0 : index
    %c208 = arith.constant 208 : index
    %41 = vector.load %arg1[%c0_41, %c0_42, %c208] : memref<1x4x256xf32, #tpu.memory_space<vmem>>, vector<1x4x16xf32>
    %42 = vector.shape_cast %41 : vector<1x4x16xf32> to vector<4x16xf32>
    %c0_43 = arith.constant 0 : index
    %c253 = arith.constant 253 : index
    %43 = vector.load %arg8[%c0_43, %c253] : memref<4x326xf32, #tpu.memory_space<vmem>>, vector<4x16xf32>
    tpu.vector_store %arg8[%c0_43, %c253], %42 {strides = array<i32>} : memref<4x326xf32, #tpu.memory_space<vmem>>, vector<4x16xf32>,
    %c0_44 = arith.constant 0 : index
    %c0_45 = arith.constant 0 : index
    %c224 = arith.constant 224 : index
    %44 = vector.load %arg1[%c0_44, %c0_45, %c224] : memref<1x4x256xf32, #tpu.memory_space<vmem>>, vector<1x4x16xf32>
    %45 = vector.shape_cast %44 : vector<1x4x16xf32> to vector<4x16xf32>
    %c0_46 = arith.constant 0 : index
    %c271 = arith.constant 271 : index
    %46 = vector.load %arg8[%c0_46, %c271] : memref<4x326xf32, #tpu.memory_space<vmem>>, vector<4x16xf32>
    tpu.vector_store %arg8[%c0_46, %c271], %45 {strides = array<i32>} : memref<4x326xf32, #tpu.memory_space<vmem>>, vector<4x16xf32>,
    %c0_47 = arith.constant 0 : index
    %c0_48 = arith.constant 0 : index
    %c240 = arith.constant 240 : index
    %47 = vector.load %arg1[%c0_47, %c0_48, %c240] : memref<1x4x256xf32, #tpu.memory_space<vmem>>, vector<1x4x16xf32>
    %48 = vector.shape_cast %47 : vector<1x4x16xf32> to vector<4x16xf32>
    %c0_49 = arith.constant 0 : index
    %c289 = arith.constant 289 : index
    %49 = vector.load %arg8[%c0_49, %c289] : memref<4x326xf32, #tpu.memory_space<vmem>>, vector<4x16xf32>
    tpu.vector_store %arg8[%c0_49, %c289], %48 {strides = array<i32>} : memref<4x326xf32, #tpu.memory_space<vmem>>, vector<4x16xf32>,
    %c0_50 = arith.constant 0 : index
    %c0_51 = arith.constant 0 : index
    %50 = vector.load %arg4[%c0_50, %c0_51] : memref<4x1xf32, #tpu.memory_space<vmem>>, vector<4x1xf32>
    %c0_52 = arith.constant 0 : index
    %c0_53 = arith.constant 0 : index
    %51 = vector.load %arg5[%c0_52, %c0_53] : memref<4x1xf32, #tpu.memory_space<vmem>>, vector<4x1xf32>
    %c0_54 = arith.constant 0 : index
    %c0_55 = arith.constant 0 : index
    %52 = vector.load %arg6[%c0_54, %c0_55] : memref<1x288xf32, #tpu.memory_space<vmem>>, vector<1x288xf32>
    %c0_56 = arith.constant 0 : index
    %c0_57 = arith.constant 0 : index
    %53 = vector.load %arg8[%c0_56, %c0_57] : memref<4x326xf32, #tpu.memory_space<vmem>>, vector<4x288xf32>
    %54 = arith.truncf %53 : vector<4x288xf32> to vector<4x288xbf16>
    %c0_58 = arith.constant 0 : index
    %c0_59 = arith.constant 0 : index
    %55 = vector.load %arg10[%c0_58, %c0_59] : memref<36x288xbf16, #tpu.memory_space<vmem>>, vector<4x288xbf16>
    tpu.vector_store %arg10[%c0_58, %c0_59], %54 {strides = array<i32>} : memref<36x288xbf16, #tpu.memory_space<vmem>>, vector<4x288xbf16>,
    %c0_60 = arith.constant 0 : index
    %c1 = arith.constant 1 : index
    %56 = vector.load %arg8[%c0_60, %c1] : memref<4x326xf32, #tpu.memory_space<vmem>>, vector<4x288xf32>
    %57 = arith.truncf %56 : vector<4x288xf32> to vector<4x288xbf16>
    %c4 = arith.constant 4 : index
    %c0_61 = arith.constant 0 : index
    %58 = vector.load %arg10[%c4, %c0_61] : memref<36x288xbf16, #tpu.memory_space<vmem>>, vector<4x288xbf16>
    tpu.vector_store %arg10[%c4, %c0_61], %57 {strides = array<i32>} : memref<36x288xbf16, #tpu.memory_space<vmem>>, vector<4x288xbf16>,
    %c0_62 = arith.constant 0 : index
    %c2 = arith.constant 2 : index
    %59 = vector.load %arg8[%c0_62, %c2] : memref<4x326xf32, #tpu.memory_space<vmem>>, vector<4x288xf32>
    %60 = arith.truncf %59 : vector<4x288xf32> to vector<4x288xbf16>
    %c8 = arith.constant 8 : index
    %c0_63 = arith.constant 0 : index
    %61 = vector.load %arg10[%c8, %c0_63] : memref<36x288xbf16, #tpu.memory_space<vmem>>, vector<4x288xbf16>
    tpu.vector_store %arg10[%c8, %c0_63], %60 {strides = array<i32>} : memref<36x288xbf16, #tpu.memory_space<vmem>>, vector<4x288xbf16>,
    %c0_64 = arith.constant 0 : index
    %c18 = arith.constant 18 : index
    %62 = vector.load %arg8[%c0_64, %c18] : memref<4x326xf32, #tpu.memory_space<vmem>>, vector<4x288xf32>
    %63 = arith.truncf %62 : vector<4x288xf32> to vector<4x288xbf16>
    %c12 = arith.constant 12 : index
    %c0_65 = arith.constant 0 : index
    %64 = vector.load %arg10[%c12, %c0_65] : memref<36x288xbf16, #tpu.memory_space<vmem>>, vector<4x288xbf16>
    tpu.vector_store %arg10[%c12, %c0_65], %63 {strides = array<i32>} : memref<36x288xbf16, #tpu.memory_space<vmem>>, vector<4x288xbf16>,
    %c0_66 = arith.constant 0 : index
    %c19_67 = arith.constant 19 : index
    %65 = vector.load %arg8[%c0_66, %c19_67] : memref<4x326xf32, #tpu.memory_space<vmem>>, vector<4x288xf32>
    %66 = arith.truncf %65 : vector<4x288xf32> to vector<4x288xbf16>
    %c16_68 = arith.constant 16 : index
    %c0_69 = arith.constant 0 : index
    %67 = vector.load %arg10[%c16_68, %c0_69] : memref<36x288xbf16, #tpu.memory_space<vmem>>, vector<4x288xbf16>
    tpu.vector_store %arg10[%c16_68, %c0_69], %66 {strides = array<i32>} : memref<36x288xbf16, #tpu.memory_space<vmem>>, vector<4x288xbf16>,
    %c0_70 = arith.constant 0 : index
    %c20 = arith.constant 20 : index
    %68 = vector.load %arg8[%c0_70, %c20] : memref<4x326xf32, #tpu.memory_space<vmem>>, vector<4x288xf32>
    %69 = arith.truncf %68 : vector<4x288xf32> to vector<4x288xbf16>
    %c20_71 = arith.constant 20 : index
    %c0_72 = arith.constant 0 : index
    %70 = vector.load %arg10[%c20_71, %c0_72] : memref<36x288xbf16, #tpu.memory_space<vmem>>, vector<4x288xbf16>
    tpu.vector_store %arg10[%c20_71, %c0_72], %69 {strides = array<i32>} : memref<36x288xbf16, #tpu.memory_space<vmem>>, vector<4x288xbf16>,
    %c0_73 = arith.constant 0 : index
    %c36 = arith.constant 36 : index
    %71 = vector.load %arg8[%c0_73, %c36] : memref<4x326xf32, #tpu.memory_space<vmem>>, vector<4x288xf32>
    %72 = arith.truncf %71 : vector<4x288xf32> to vector<4x288xbf16>
    %c24 = arith.constant 24 : index
    %c0_74 = arith.constant 0 : index
    %73 = vector.load %arg10[%c24, %c0_74] : memref<36x288xbf16, #tpu.memory_space<vmem>>, vector<4x288xbf16>
    tpu.vector_store %arg10[%c24, %c0_74], %72 {strides = array<i32>} : memref<36x288xbf16, #tpu.memory_space<vmem>>, vector<4x288xbf16>,
    %c0_75 = arith.constant 0 : index
    %c37_76 = arith.constant 37 : index
    %74 = vector.load %arg8[%c0_75, %c37_76] : memref<4x326xf32, #tpu.memory_space<vmem>>, vector<4x288xf32>
    %75 = arith.truncf %74 : vector<4x288xf32> to vector<4x288xbf16>
    %c28 = arith.constant 28 : index
    %c0_77 = arith.constant 0 : index
    %76 = vector.load %arg10[%c28, %c0_77] : memref<36x288xbf16, #tpu.memory_space<vmem>>, vector<4x288xbf16>
    tpu.vector_store %arg10[%c28, %c0_77], %75 {strides = array<i32>} : memref<36x288xbf16, #tpu.memory_space<vmem>>, vector<4x288xbf16>,
    %c0_78 = arith.constant 0 : index
    %c38 = arith.constant 38 : index
    %77 = vector.load %arg8[%c0_78, %c38] : memref<4x326xf32, #tpu.memory_space<vmem>>, vector<4x288xf32>
    %78 = arith.truncf %77 : vector<4x288xf32> to vector<4x288xbf16>
    %c32_79 = arith.constant 32 : index
    %c0_80 = arith.constant 0 : index
    %79 = vector.load %arg10[%c32_79, %c0_80] : memref<36x288xbf16, #tpu.memory_space<vmem>>, vector<4x288xbf16>
    tpu.vector_store %arg10[%c32_79, %c0_80], %78 {strides = array<i32>} : memref<36x288xbf16, #tpu.memory_space<vmem>>, vector<4x288xbf16>,
    %c0_81 = arith.constant 0 : index
    %c0_82 = arith.constant 0 : index
    %80 = vector.load %arg2[%c0_81, %c0_82] : memref<4x36xbf16, #tpu.memory_space<vmem>>, vector<4x36xbf16>
    %c0_83 = arith.constant 0 : index
    %c0_84 = arith.constant 0 : index
    %81 = vector.load %arg10[%c0_83, %c0_84] : memref<36x288xbf16, #tpu.memory_space<vmem>>, vector<36x288xbf16>
    %cst_85 = arith.constant dense<0.000000e+00> : vector<4x288xf32>
    %82 = tpu.matmul %80, %81, %cst_85 {dimension_numbers = #tpu.dot_dimension_numbers<[1], [0], [0], [1], [0, 0, 1, 1], [], []>} : vector<4x36xbf16>, vector<36x288xbf16>, vector<4x288xf32> -> vector<4x288xf32>
    %83 = vector.broadcast %50 : vector<4x1xf32> to vector<4x288xf32>
    %84 = arith.addf %82, %83 : vector<4x288xf32>
    %cst_86 = arith.constant 0.000000e+00 : f32
    %85 = vector.broadcast %cst_86 : f32 to vector<4x288xf32>
    %86 = arith.maximumf %84, %85 : vector<4x288xf32>
    %87 = vector.broadcast %52 : vector<1x288xf32> to vector<4x288xf32>
    %88 = arith.mulf %86, %87 : vector<4x288xf32>
    %cst_87 = arith.constant 0.000000e+00 : bf16
    %89 = vector.broadcast %cst_87 : bf16 to vector<4x326xbf16>
    %c0_88 = arith.constant 0 : index
    %c0_89 = arith.constant 0 : index
    %90 = vector.load %arg9[%c0_88, %c0_89] : memref<4x326xbf16, #tpu.memory_space<vmem>>, vector<4x326xbf16>
    tpu.vector_store %arg9[%c0_88, %c0_89], %89 {strides = array<i32>} : memref<4x326xbf16, #tpu.memory_space<vmem>>, vector<4x326xbf16>,
    %91 = arith.truncf %88 : vector<4x288xf32> to vector<4x288xbf16>
    %c0_90 = arith.constant 0 : index
    %c19_91 = arith.constant 19 : index
    %92 = vector.load %arg9[%c0_90, %c19_91] : memref<4x326xbf16, #tpu.memory_space<vmem>>, vector<4x288xbf16>
    tpu.vector_store %arg9[%c0_90, %c19_91], %91 {strides = array<i32>} : memref<4x326xbf16, #tpu.memory_space<vmem>>, vector<4x288xbf16>,
    %c0_92 = arith.constant 0 : index
    %c0_93 = arith.constant 0 : index
    %93 = vector.load %arg9[%c0_92, %c0_93] : memref<4x326xbf16, #tpu.memory_space<vmem>>, vector<4x288xbf16>
    %c0_94 = arith.constant 0 : index
    %c0_95 = arith.constant 0 : index
    %94 = vector.load %arg10[%c0_94, %c0_95] : memref<36x288xbf16, #tpu.memory_space<vmem>>, vector<4x288xbf16>
    tpu.vector_store %arg10[%c0_94, %c0_95], %93 {strides = array<i32>} : memref<36x288xbf16, #tpu.memory_space<vmem>>, vector<4x288xbf16>,
    %c0_96 = arith.constant 0 : index
    %c1_97 = arith.constant 1 : index
    %95 = vector.load %arg9[%c0_96, %c1_97] : memref<4x326xbf16, #tpu.memory_space<vmem>>, vector<4x288xbf16>
    %c4_98 = arith.constant 4 : index
    %c0_99 = arith.constant 0 : index
    %96 = vector.load %arg10[%c4_98, %c0_99] : memref<36x288xbf16, #tpu.memory_space<vmem>>, vector<4x288xbf16>
    tpu.vector_store %arg10[%c4_98, %c0_99], %95 {strides = array<i32>} : memref<36x288xbf16, #tpu.memory_space<vmem>>, vector<4x288xbf16>,
    %c0_100 = arith.constant 0 : index
    %c2_101 = arith.constant 2 : index
    %97 = vector.load %arg9[%c0_100, %c2_101] : memref<4x326xbf16, #tpu.memory_space<vmem>>, vector<4x288xbf16>
    %c8_102 = arith.constant 8 : index
    %c0_103 = arith.constant 0 : index
    %98 = vector.load %arg10[%c8_102, %c0_103] : memref<36x288xbf16, #tpu.memory_space<vmem>>, vector<4x288xbf16>
    tpu.vector_store %arg10[%c8_102, %c0_103], %97 {strides = array<i32>} : memref<36x288xbf16, #tpu.memory_space<vmem>>, vector<4x288xbf16>,
    %c0_104 = arith.constant 0 : index
    %c18_105 = arith.constant 18 : index
    %99 = vector.load %arg9[%c0_104, %c18_105] : memref<4x326xbf16, #tpu.memory_space<vmem>>, vector<4x288xbf16>
    %c12_106 = arith.constant 12 : index
    %c0_107 = arith.constant 0 : index
    %100 = vector.load %arg10[%c12_106, %c0_107] : memref<36x288xbf16, #tpu.memory_space<vmem>>, vector<4x288xbf16>
    tpu.vector_store %arg10[%c12_106, %c0_107], %99 {strides = array<i32>} : memref<36x288xbf16, #tpu.memory_space<vmem>>, vector<4x288xbf16>,
    %c0_108 = arith.constant 0 : index
    %c19_109 = arith.constant 19 : index
    %101 = vector.load %arg9[%c0_108, %c19_109] : memref<4x326xbf16, #tpu.memory_space<vmem>>, vector<4x288xbf16>
    %c16_110 = arith.constant 16 : index
    %c0_111 = arith.constant 0 : index
    %102 = vector.load %arg10[%c16_110, %c0_111] : memref<36x288xbf16, #tpu.memory_space<vmem>>, vector<4x288xbf16>
    tpu.vector_store %arg10[%c16_110, %c0_111], %101 {strides = array<i32>} : memref<36x288xbf16, #tpu.memory_space<vmem>>, vector<4x288xbf16>,
    %c0_112 = arith.constant 0 : index
    %c20_113 = arith.constant 20 : index
    %103 = vector.load %arg9[%c0_112, %c20_113] : memref<4x326xbf16, #tpu.memory_space<vmem>>, vector<4x288xbf16>
    %c20_114 = arith.constant 20 : index
    %c0_115 = arith.constant 0 : index
    %104 = vector.load %arg10[%c20_114, %c0_115] : memref<36x288xbf16, #tpu.memory_space<vmem>>, vector<4x288xbf16>
    tpu.vector_store %arg10[%c20_114, %c0_115], %103 {strides = array<i32>} : memref<36x288xbf16, #tpu.memory_space<vmem>>, vector<4x288xbf16>,
    %c0_116 = arith.constant 0 : index
    %c36_117 = arith.constant 36 : index
    %105 = vector.load %arg9[%c0_116, %c36_117] : memref<4x326xbf16, #tpu.memory_space<vmem>>, vector<4x288xbf16>
    %c24_118 = arith.constant 24 : index
    %c0_119 = arith.constant 0 : index
    %106 = vector.load %arg10[%c24_118, %c0_119] : memref<36x288xbf16, #tpu.memory_space<vmem>>, vector<4x288xbf16>
    tpu.vector_store %arg10[%c24_118, %c0_119], %105 {strides = array<i32>} : memref<36x288xbf16, #tpu.memory_space<vmem>>, vector<4x288xbf16>,
    %c0_120 = arith.constant 0 : index
    %c37_121 = arith.constant 37 : index
    %107 = vector.load %arg9[%c0_120, %c37_121] : memref<4x326xbf16, #tpu.memory_space<vmem>>, vector<4x288xbf16>
    %c28_122 = arith.constant 28 : index
    %c0_123 = arith.constant 0 : index
    %108 = vector.load %arg10[%c28_122, %c0_123] : memref<36x288xbf16, #tpu.memory_space<vmem>>, vector<4x288xbf16>
    tpu.vector_store %arg10[%c28_122, %c0_123], %107 {strides = array<i32>} : memref<36x288xbf16, #tpu.memory_space<vmem>>, vector<4x288xbf16>,
    %c0_124 = arith.constant 0 : index
    %c38_125 = arith.constant 38 : index
    %109 = vector.load %arg9[%c0_124, %c38_125] : memref<4x326xbf16, #tpu.memory_space<vmem>>, vector<4x288xbf16>
    %c32_126 = arith.constant 32 : index
    %c0_127 = arith.constant 0 : index
    %110 = vector.load %arg10[%c32_126, %c0_127] : memref<36x288xbf16, #tpu.memory_space<vmem>>, vector<4x288xbf16>
    tpu.vector_store %arg10[%c32_126, %c0_127], %109 {strides = array<i32>} : memref<36x288xbf16, #tpu.memory_space<vmem>>, vector<4x288xbf16>,
    %c0_128 = arith.constant 0 : index
    %c0_129 = arith.constant 0 : index
    %111 = vector.load %arg3[%c0_128, %c0_129] : memref<4x36xbf16, #tpu.memory_space<vmem>>, vector<4x36xbf16>
    %c0_130 = arith.constant 0 : index
    %c0_131 = arith.constant 0 : index
    %112 = vector.load %arg10[%c0_130, %c0_131] : memref<36x288xbf16, #tpu.memory_space<vmem>>, vector<36x288xbf16>
    %cst_132 = arith.constant dense<0.000000e+00> : vector<4x288xf32>
    %113 = tpu.matmul %111, %112, %cst_132 {dimension_numbers = #tpu.dot_dimension_numbers<[1], [0], [0], [1], [0, 0, 1, 1], [], []>} : vector<4x36xbf16>, vector<36x288xbf16>, vector<4x288xf32> -> vector<4x288xf32>
    %c0_133 = arith.constant 0 : index
    %c19_134 = arith.constant 19 : index
    %114 = vector.load %arg8[%c0_133, %c19_134] : memref<4x326xf32, #tpu.memory_space<vmem>>, vector<4x288xf32>
    %115 = vector.broadcast %51 : vector<4x1xf32> to vector<4x288xf32>
    %116 = arith.addf %113, %115 : vector<4x288xf32>
    %117 = arith.addf %116, %114 : vector<4x288xf32>
    %cst_135 = arith.constant 0.000000e+00 : f32
    %118 = vector.broadcast %cst_135 : f32 to vector<4x288xf32>
    %119 = arith.maximumf %117, %118 : vector<4x288xf32>
    %120 = vector.extract_strided_slice %119 {offsets = [0, 0], sizes = [4, 16], strides = [1, 1]} : vector<4x288xf32> to vector<4x16xf32>
    %121 = vector.shape_cast %120 : vector<4x16xf32> to vector<1x4x16xf32>
    %c0_136 = arith.constant 0 : index
    %c0_137 = arith.constant 0 : index
    %c0_138 = arith.constant 0 : index
    %122 = vector.load %arg7[%c0_136, %c0_137, %c0_138] : memref<1x4x256xf32, #tpu.memory_space<vmem>>, vector<1x4x16xf32>
    tpu.vector_store %arg7[%c0_136, %c0_137, %c0_138], %121 {strides = array<i32>} : memref<1x4x256xf32, #tpu.memory_space<vmem>>, vector<1x4x16xf32>,
    %123 = vector.extract_strided_slice %119 {offsets = [0, 18], sizes = [4, 16], strides = [1, 1]} : vector<4x288xf32> to vector<4x16xf32>
    %124 = vector.shape_cast %123 : vector<4x16xf32> to vector<1x4x16xf32>
    %c0_139 = arith.constant 0 : index
    %c0_140 = arith.constant 0 : index
    %c16_141 = arith.constant 16 : index
    %125 = vector.load %arg7[%c0_139, %c0_140, %c16_141] : memref<1x4x256xf32, #tpu.memory_space<vmem>>, vector<1x4x16xf32>
    tpu.vector_store %arg7[%c0_139, %c0_140, %c16_141], %124 {strides = array<i32>} : memref<1x4x256xf32, #tpu.memory_space<vmem>>, vector<1x4x16xf32>,
    %126 = vector.extract_strided_slice %119 {offsets = [0, 36], sizes = [4, 16], strides = [1, 1]} : vector<4x288xf32> to vector<4x16xf32>
    %127 = vector.shape_cast %126 : vector<4x16xf32> to vector<1x4x16xf32>
    %c0_142 = arith.constant 0 : index
    %c0_143 = arith.constant 0 : index
    %c32_144 = arith.constant 32 : index
    %128 = vector.load %arg7[%c0_142, %c0_143, %c32_144] : memref<1x4x256xf32, #tpu.memory_space<vmem>>, vector<1x4x16xf32>
    tpu.vector_store %arg7[%c0_142, %c0_143, %c32_144], %127 {strides = array<i32>} : memref<1x4x256xf32, #tpu.memory_space<vmem>>, vector<1x4x16xf32>,
    %129 = vector.extract_strided_slice %119 {offsets = [0, 54], sizes = [4, 16], strides = [1, 1]} : vector<4x288xf32> to vector<4x16xf32>
    %130 = vector.shape_cast %129 : vector<4x16xf32> to vector<1x4x16xf32>
    %c0_145 = arith.constant 0 : index
    %c0_146 = arith.constant 0 : index
    %c48_147 = arith.constant 48 : index
    %131 = vector.load %arg7[%c0_145, %c0_146, %c48_147] : memref<1x4x256xf32, #tpu.memory_space<vmem>>, vector<1x4x16xf32>
    tpu.vector_store %arg7[%c0_145, %c0_146, %c48_147], %130 {strides = array<i32>} : memref<1x4x256xf32, #tpu.memory_space<vmem>>, vector<1x4x16xf32>,
    %132 = vector.extract_strided_slice %119 {offsets = [0, 72], sizes = [4, 16], strides = [1, 1]} : vector<4x288xf32> to vector<4x16xf32>
    %133 = vector.shape_cast %132 : vector<4x16xf32> to vector<1x4x16xf32>
    %c0_148 = arith.constant 0 : index
    %c0_149 = arith.constant 0 : index
    %c64_150 = arith.constant 64 : index
    %134 = vector.load %arg7[%c0_148, %c0_149, %c64_150] : memref<1x4x256xf32, #tpu.memory_space<vmem>>, vector<1x4x16xf32>
    tpu.vector_store %arg7[%c0_148, %c0_149, %c64_150], %133 {strides = array<i32>} : memref<1x4x256xf32, #tpu.memory_space<vmem>>, vector<1x4x16xf32>,
    %135 = vector.extract_strided_slice %119 {offsets = [0, 90], sizes = [4, 16], strides = [1, 1]} : vector<4x288xf32> to vector<4x16xf32>
    %136 = vector.shape_cast %135 : vector<4x16xf32> to vector<1x4x16xf32>
    %c0_151 = arith.constant 0 : index
    %c0_152 = arith.constant 0 : index
    %c80_153 = arith.constant 80 : index
    %137 = vector.load %arg7[%c0_151, %c0_152, %c80_153] : memref<1x4x256xf32, #tpu.memory_space<vmem>>, vector<1x4x16xf32>
    tpu.vector_store %arg7[%c0_151, %c0_152, %c80_153], %136 {strides = array<i32>} : memref<1x4x256xf32, #tpu.memory_space<vmem>>, vector<1x4x16xf32>,
    %138 = vector.extract_strided_slice %119 {offsets = [0, 108], sizes = [4, 16], strides = [1, 1]} : vector<4x288xf32> to vector<4x16xf32>
    %139 = vector.shape_cast %138 : vector<4x16xf32> to vector<1x4x16xf32>
    %c0_154 = arith.constant 0 : index
    %c0_155 = arith.constant 0 : index
    %c96_156 = arith.constant 96 : index
    %140 = vector.load %arg7[%c0_154, %c0_155, %c96_156] : memref<1x4x256xf32, #tpu.memory_space<vmem>>, vector<1x4x16xf32>
    tpu.vector_store %arg7[%c0_154, %c0_155, %c96_156], %139 {strides = array<i32>} : memref<1x4x256xf32, #tpu.memory_space<vmem>>, vector<1x4x16xf32>,
    %141 = vector.extract_strided_slice %119 {offsets = [0, 126], sizes = [4, 16], strides = [1, 1]} : vector<4x288xf32> to vector<4x16xf32>
    %142 = vector.shape_cast %141 : vector<4x16xf32> to vector<1x4x16xf32>
    %c0_157 = arith.constant 0 : index
    %c0_158 = arith.constant 0 : index
    %c112_159 = arith.constant 112 : index
    %143 = vector.load %arg7[%c0_157, %c0_158, %c112_159] : memref<1x4x256xf32, #tpu.memory_space<vmem>>, vector<1x4x16xf32>
    tpu.vector_store %arg7[%c0_157, %c0_158, %c112_159], %142 {strides = array<i32>} : memref<1x4x256xf32, #tpu.memory_space<vmem>>, vector<1x4x16xf32>,
    %144 = vector.extract_strided_slice %119 {offsets = [0, 144], sizes = [4, 16], strides = [1, 1]} : vector<4x288xf32> to vector<4x16xf32>
    %145 = vector.shape_cast %144 : vector<4x16xf32> to vector<1x4x16xf32>
    %c0_160 = arith.constant 0 : index
    %c0_161 = arith.constant 0 : index
    %c128_162 = arith.constant 128 : index
    %146 = vector.load %arg7[%c0_160, %c0_161, %c128_162] : memref<1x4x256xf32, #tpu.memory_space<vmem>>, vector<1x4x16xf32>
    tpu.vector_store %arg7[%c0_160, %c0_161, %c128_162], %145 {strides = array<i32>} : memref<1x4x256xf32, #tpu.memory_space<vmem>>, vector<1x4x16xf32>,
    %147 = vector.extract_strided_slice %119 {offsets = [0, 162], sizes = [4, 16], strides = [1, 1]} : vector<4x288xf32> to vector<4x16xf32>
    %148 = vector.shape_cast %147 : vector<4x16xf32> to vector<1x4x16xf32>
    %c0_163 = arith.constant 0 : index
    %c0_164 = arith.constant 0 : index
    %c144_165 = arith.constant 144 : index
    %149 = vector.load %arg7[%c0_163, %c0_164, %c144_165] : memref<1x4x256xf32, #tpu.memory_space<vmem>>, vector<1x4x16xf32>
    tpu.vector_store %arg7[%c0_163, %c0_164, %c144_165], %148 {strides = array<i32>} : memref<1x4x256xf32, #tpu.memory_space<vmem>>, vector<1x4x16xf32>,
    %150 = vector.extract_strided_slice %119 {offsets = [0, 180], sizes = [4, 16], strides = [1, 1]} : vector<4x288xf32> to vector<4x16xf32>
    %151 = vector.shape_cast %150 : vector<4x16xf32> to vector<1x4x16xf32>
    %c0_166 = arith.constant 0 : index
    %c0_167 = arith.constant 0 : index
    %c160_168 = arith.constant 160 : index
    %152 = vector.load %arg7[%c0_166, %c0_167, %c160_168] : memref<1x4x256xf32, #tpu.memory_space<vmem>>, vector<1x4x16xf32>
    tpu.vector_store %arg7[%c0_166, %c0_167, %c160_168], %151 {strides = array<i32>} : memref<1x4x256xf32, #tpu.memory_space<vmem>>, vector<1x4x16xf32>,
    %153 = vector.extract_strided_slice %119 {offsets = [0, 198], sizes = [4, 16], strides = [1, 1]} : vector<4x288xf32> to vector<4x16xf32>
    %154 = vector.shape_cast %153 : vector<4x16xf32> to vector<1x4x16xf32>
    %c0_169 = arith.constant 0 : index
    %c0_170 = arith.constant 0 : index
    %c176_171 = arith.constant 176 : index
    %155 = vector.load %arg7[%c0_169, %c0_170, %c176_171] : memref<1x4x256xf32, #tpu.memory_space<vmem>>, vector<1x4x16xf32>
    tpu.vector_store %arg7[%c0_169, %c0_170, %c176_171], %154 {strides = array<i32>} : memref<1x4x256xf32, #tpu.memory_space<vmem>>, vector<1x4x16xf32>,
    %156 = vector.extract_strided_slice %119 {offsets = [0, 216], sizes = [4, 16], strides = [1, 1]} : vector<4x288xf32> to vector<4x16xf32>
    %157 = vector.shape_cast %156 : vector<4x16xf32> to vector<1x4x16xf32>
    %c0_172 = arith.constant 0 : index
    %c0_173 = arith.constant 0 : index
    %c192_174 = arith.constant 192 : index
    %158 = vector.load %arg7[%c0_172, %c0_173, %c192_174] : memref<1x4x256xf32, #tpu.memory_space<vmem>>, vector<1x4x16xf32>
    tpu.vector_store %arg7[%c0_172, %c0_173, %c192_174], %157 {strides = array<i32>} : memref<1x4x256xf32, #tpu.memory_space<vmem>>, vector<1x4x16xf32>,
    %159 = vector.extract_strided_slice %119 {offsets = [0, 234], sizes = [4, 16], strides = [1, 1]} : vector<4x288xf32> to vector<4x16xf32>
    %160 = vector.shape_cast %159 : vector<4x16xf32> to vector<1x4x16xf32>
    %c0_175 = arith.constant 0 : index
    %c0_176 = arith.constant 0 : index
    %c208_177 = arith.constant 208 : index
    %161 = vector.load %arg7[%c0_175, %c0_176, %c208_177] : memref<1x4x256xf32, #tpu.memory_space<vmem>>, vector<1x4x16xf32>
    tpu.vector_store %arg7[%c0_175, %c0_176, %c208_177], %160 {strides = array<i32>} : memref<1x4x256xf32, #tpu.memory_space<vmem>>, vector<1x4x16xf32>,
    %162 = vector.extract_strided_slice %119 {offsets = [0, 252], sizes = [4, 16], strides = [1, 1]} : vector<4x288xf32> to vector<4x16xf32>
    %163 = vector.shape_cast %162 : vector<4x16xf32> to vector<1x4x16xf32>
    %c0_178 = arith.constant 0 : index
    %c0_179 = arith.constant 0 : index
    %c224_180 = arith.constant 224 : index
    %164 = vector.load %arg7[%c0_178, %c0_179, %c224_180] : memref<1x4x256xf32, #tpu.memory_space<vmem>>, vector<1x4x16xf32>
    tpu.vector_store %arg7[%c0_178, %c0_179, %c224_180], %163 {strides = array<i32>} : memref<1x4x256xf32, #tpu.memory_space<vmem>>, vector<1x4x16xf32>,
    %165 = vector.extract_strided_slice %119 {offsets = [0, 270], sizes = [4, 16], strides = [1, 1]} : vector<4x288xf32> to vector<4x16xf32>
    %166 = vector.shape_cast %165 : vector<4x16xf32> to vector<1x4x16xf32>
    %c0_181 = arith.constant 0 : index
    %c0_182 = arith.constant 0 : index
    %c240_183 = arith.constant 240 : index
    %167 = vector.load %arg7[%c0_181, %c0_182, %c240_183] : memref<1x4x256xf32, #tpu.memory_space<vmem>>, vector<1x4x16xf32>
    tpu.vector_store %arg7[%c0_181, %c0_182, %c240_183], %166 {strides = array<i32>} : memref<1x4x256xf32, #tpu.memory_space<vmem>>, vector<1x4x16xf32>,
    return
  }
  func.func @transform_0(%arg0: i32) -> (i32, i32, i32) {
    %c0_i32 = arith.constant 0 : i32
    %c0_i32_0 = arith.constant 0 : i32
    %c0_i32_1 = arith.constant 0 : i32
    return %arg0, %c0_i32, %c0_i32_0 : i32, i32, i32
  }
  func.func @transform_1(%arg0: i32) -> (i32, i32) {
    %c0_i32 = arith.constant 0 : i32
    %c0_i32_0 = arith.constant 0 : i32
    %c0_i32_1 = arith.constant 0 : i32
    return %c0_i32, %c0_i32_0 : i32, i32
  }
  func.func @transform_2(%arg0: i32) -> (i32, i32) {
    %c0_i32 = arith.constant 0 : i32
    %c0_i32_0 = arith.constant 0 : i32
    %c0_i32_1 = arith.constant 0 : i32
    return %c0_i32, %c0_i32_0 : i32, i32
  }
  func.func @transform_3(%arg0: i32) -> (i32, i32) {
    %c0_i32 = arith.constant 0 : i32
    %c0_i32_0 = arith.constant 0 : i32
    %c0_i32_1 = arith.constant 0 : i32
    return %c0_i32, %c0_i32_0 : i32, i32
  }
  func.func @transform_4(%arg0: i32) -> (i32, i32) {
    %c0_i32 = arith.constant 0 : i32
    %c0_i32_0 = arith.constant 0 : i32
    %c0_i32_1 = arith.constant 0 : i32
    return %c0_i32, %c0_i32_0 : i32, i32
  }
  func.func @transform_5(%arg0: i32) -> (i32, i32) {
    %c0_i32 = arith.constant 0 : i32
    %c0_i32_0 = arith.constant 0 : i32
    %c0_i32_1 = arith.constant 0 : i32
    return %c0_i32, %c0_i32_0 : i32, i32
  }
  func.func @transform_6(%arg0: i32) -> (i32, i32, i32) {
    %c0_i32 = arith.constant 0 : i32
    %c0_i32_0 = arith.constant 0 : i32
    %c0_i32_1 = arith.constant 0 : i32
    return %arg0, %c0_i32, %c0_i32_0 : i32, i32, i32
  }
}

</mosaic_0001>

<llo_original>
// kernel: tpu_custom_call.1
$region0: #{tpu_custom_call.1}
  #allocation0 [shape = 'u32[]', space=smem, size = 0x4, offset = 0x4, fixed_abs, tag = 'smem constant byte address 0x4 - core index']
  #allocation1 [shape = 'u32[72,128]{1,0:T(1,128)}', space=vmem, size = 0x9000, scoped, tag = 'internal scratch']
  #allocation2 [shape = 'f32[4,326]{1,0:T(4,128)}', space=vmem, size = 0x1800, scoped, tag = 'scratch operand']
  #allocation3 [shape = 'bf16[4,326]{1,0:T(4,128)(2,1)}', space=vmem, size = 0xc00, scoped, tag = 'scratch operand']
  #allocation4 [shape = 'bf16[36,288]{1,0:T(8,128)(2,1)}', space=vmem, size = 0x7800, scoped, tag = 'scratch operand']
  %s0 = inlined_call_operand.hbm [shape: f32[2,4,256], index: 0, kind: input, shape index: {}]
  %s1 = inlined_call_operand.vmem [shape: bf16[4,36], index: 1, kind: input, shape index: {}]
  %s2 = inlined_call_operand.vmem [shape: bf16[4,36], index: 2, kind: input, shape index: {}]
  %s3 = inlined_call_operand.vmem [shape: f32[4,1], index: 3, kind: input, shape index: {}]
  %s4 = inlined_call_operand.vmem [shape: f32[4,1], index: 4, kind: input, shape index: {}]
  %s5 = inlined_call_operand.vmem [shape: f32[1,288], index: 5, kind: input, shape index: {}]
  %s6 = inlined_call_operand.hbm [shape: f32[2,4,256], index: 6, kind: output, shape index: {}]
  %s7 = sld [smem:[#allocation0]]
  $region61: #{tpu_custom_call.1} parent=0
    _
  %s9 = ssub.s32 1, %s7
  %s10 = scalar_select 0, %s9, %s7
  $region1: #{tpu_custom_call.1} parent=0
    #allocation5 [shape = 'u8[8192]{0}', space=vmem, size = 0x2000, scoped, tag = 'input window, operand 0']
    #allocation6 [shape = 's32[2]{0}', space=sflag, size = 0x8, scoped, tag = 'scoped memory for tpu_custom_call.1']
    #allocation7 [shape = 's32[2]{0}', space=sflag, size = 0x8, scoped, tag = 'scoped memory for tpu_custom_call.1']
    #allocation8 [shape = 'u8[8192]{0}', space=vmem, size = 0x2000, scoped, tag = 'output window, operand 0']
    %11 = vsyncpa [#allocation6], 0
    %s12 = scalar_lea.sflag [#allocation6], 1
    %13 = vsyncpa %s12, 0
    %14 = vsyncpa [#allocation7], 0
    %s15 = scalar_lea.sflag [#allocation7], 1
    %16 = vsyncpa %s15, 0
    loop: start=0, step=1, limit=4
    $region2: #{tpu_custom_call.1} parent=1 // loop_pre_header
      _
    $region3: #{tpu_custom_call.1} parent=1 // loop_header
      %s18 = sphi 0, %s22
      %p19 = scmp.ge.s32.totalorder %s18, 4
      %s28 = sphi 0, %s30
      %s31 = sphi 0, %s28
      %s32 = sphi 0, %s31
      %s48 = sphi 0, %s32
      %s52 = sphi 0, %s52
      %s54 = sphi 0, %s52
      %s55 = sphi 0, %s54
      %s69 = sphi 0, %s55
      %s73 = sphi 0, %s73
      %s75 = sphi 0, %s73
      %s76 = sphi 0, %s75
      %s90 = sphi 0, %s76
      %s94 = sphi 0, %s94
      %s96 = sphi 0, %s94
      %s97 = sphi 0, %s96
      %s111 = sphi 0, %s97
      %s115 = sphi 0, %s115
      %s117 = sphi 0, %s115
      %s118 = sphi 0, %s117
      %s132 = sphi 0, %s118
      %s136 = sphi 0, %s136
      %s138 = sphi 0, %s136
      %s139 = sphi 0, %s138
      %s153 = sphi 0, %s139
      %s159 = sphi 0, %s161
      %s162 = sphi 0, %s159
      %s163 = sphi 0, %s162
      %s179 = sphi 0, %s163
    $region4: #{tpu_custom_call.1} parent=1 // loop_header_branch
      %21 = sbr.rel (%p19) target = $region8
    $region5: #{tpu_custom_call.1} parent=1 // loop_body
      %s23 = ssub.s32 %s18, 1
      %s24 = ssub.s32 %s18, 2
      %s25 = sadd.s32 %s18, 1
      %s26 = ssub.s32 %s18, %s25
      %p27 = scmp.eq.s32.totalorder %s26, 0
      %s29 = sadd.s32 %s28, 1
      %s30 = scalar_select %p27, %s28, %s29
      %p33 = pneg %p27
      %p34 = scmp.eq.s32.totalorder %s18, 1
      %p35 = por %p33, %p34
      %p36 = scmp.ne.s32.totalorder %s28, %s31
      %p37 = scmp.eq.s32.totalorder %s18, 0
      %p38 = por %p36, %p37
      %p39 = scmp.ne.s32.totalorder %s28, %s31
      %p40 = scmp.eq.s32.totalorder %s23, 1
      %p41 = por %p39, %p40
      %p42 = scmp.ne.s32.totalorder %s31, %s32
      %p43 = scmp.eq.s32.totalorder %s23, 0
      %p44 = por %p42, %p43
      %p45 = scmp.ne.s32.totalorder %s31, %s32
      %p46 = scmp.eq.s32.totalorder %s24, 1
      %p47 = por %p45, %p46
      %p49 = scmp.ne.s32.totalorder %s32, %s48
      %p50 = scmp.eq.s32.totalorder %s24, 0
      %p51 = por %p49, %p50
      %s53 = sadd.s32 %s52, 1
      %p56 = scmp.eq.s32.totalorder %s18, 1
      %p57 = scmp.ne.s32.totalorder %s52, %s54
      %p58 = scmp.eq.s32.totalorder %s18, 0
      %p59 = por %p57, %p58
      %p60 = scmp.ne.s32.totalorder %s52, %s54
      %p61 = scmp.eq.s32.totalorder %s23, 1
      %p62 = por %p60, %p61
      %p63 = scmp.ne.s32.totalorder %s54, %s55
      %p64 = scmp.eq.s32.totalorder %s23, 0
      %p65 = por %p63, %p64
      %p66 = scmp.ne.s32.totalorder %s54, %s55
      %p67 = scmp.eq.s32.totalorder %s24, 1
      %p68 = por %p66, %p67
      %p70 = scmp.ne.s32.totalorder %s55, %s69
      %p71 = scmp.eq.s32.totalorder %s24, 0
      %p72 = por %p70, %p71
      %s74 = sadd.s32 %s73, 1
      %p77 = scmp.eq.s32.totalorder %s18, 1
      %p78 = scmp.ne.s32.totalorder %s73, %s75
      %p79 = scmp.eq.s32.totalorder %s18, 0
      %p80 = por %p78, %p79
      %p81 = scmp.ne.s32.totalorder %s73, %s75
      %p82 = scmp.eq.s32.totalorder %s23, 1
      %p83 = por %p81, %p82
      %p84 = scmp.ne.s32.totalorder %s75, %s76
      %p85 = scmp.eq.s32.totalorder %s23, 0
      %p86 = por %p84, %p85
      %p87 = scmp.ne.s32.totalorder %s75, %s76
      %p88 = scmp.eq.s32.totalorder %s24, 1
      %p89 = por %p87, %p88
      %p91 = scmp.ne.s32.totalorder %s76, %s90
      %p92 = scmp.eq.s32.totalorder %s24, 0
      %p93 = por %p91, %p92
      %s95 = sadd.s32 %s94, 1
      %p98 = scmp.eq.s32.totalorder %s18, 1
      %p99 = scmp.ne.s32.totalorder %s94, %s96
      %p100 = scmp.eq.s32.totalorder %s18, 0
      %p101 = por %p99, %p100
      %p102 = scmp.ne.s32.totalorder %s94, %s96
      %p103 = scmp.eq.s32.totalorder %s23, 1
      %p104 = por %p102, %p103
      %p105 = scmp.ne.s32.totalorder %s96, %s97
      %p106 = scmp.eq.s32.totalorder %s23, 0
      %p107 = por %p105, %p106
      %p108 = scmp.ne.s32.totalorder %s96, %s97
      %p109 = scmp.eq.s32.totalorder %s24, 1
      %p110 = por %p108, %p109
      %p112 = scmp.ne.s32.totalorder %s97, %s111
      %p113 = scmp.eq.s32.totalorder %s24, 0
      %p114 = por %p112, %p113
      %s116 = sadd.s32 %s115, 1
      %p119 = scmp.eq.s32.totalorder %s18, 1
      %p120 = scmp.ne.s32.totalorder %s115, %s117
      %p121 = scmp.eq.s32.totalorder %s18, 0
      %p122 = por %p120, %p121
      %p123 = scmp.ne.s32.totalorder %s115, %s117
      %p124 = scmp.eq.s32.totalorder %s23, 1
      %p125 = por %p123, %p124
      %p126 = scmp.ne.s32.totalorder %s117, %s118
      %p127 = scmp.eq.s32.totalorder %s23, 0
      %p128 = por %p126, %p127
      %p129 = scmp.ne.s32.totalorder %s117, %s118
      %p130 = scmp.eq.s32.totalorder %s24, 1
      %p131 = por %p129, %p130
      %p133 = scmp.ne.s32.totalorder %s118, %s132
      %p134 = scmp.eq.s32.totalorder %s24, 0
      %p135 = por %p133, %p134
      %s137 = sadd.s32 %s136, 1
      %p140 = scmp.eq.s32.totalorder %s18, 1
      %p141 = scmp.ne.s32.totalorder %s136, %s138
      %p142 = scmp.eq.s32.totalorder %s18, 0
      %p143 = por %p141, %p142
      %p144 = scmp.ne.s32.totalorder %s136, %s138
      %p145 = scmp.eq.s32.totalorder %s23, 1
      %p146 = por %p144, %p145
      %p147 = scmp.ne.s32.totalorder %s138, %s139
      %p148 = scmp.eq.s32.totalorder %s23, 0
      %p149 = por %p147, %p148
      %p150 = scmp.ne.s32.totalorder %s138, %s139
      %p151 = scmp.eq.s32.totalorder %s24, 1
      %p152 = por %p150, %p151
      %p154 = scmp.ne.s32.totalorder %s139, %s153
      %p155 = scmp.eq.s32.totalorder %s24, 0
      %p156 = por %p154, %p155
      %s157 = ssub.s32 %s18, %s25
      %p158 = scmp.eq.s32.totalorder %s157, 0
      %s160 = sadd.s32 %s159, 1
      %s161 = scalar_select %p158, %s159, %s160
      %p164 = pneg %p158
      %p165 = scmp.eq.s32.totalorder %s18, 1
      %p166 = por %p164, %p165
      %p167 = scmp.ne.s32.totalorder %s159, %s162
      %p168 = scmp.eq.s32.totalorder %s18, 0
      %p169 = por %p167, %p168
      %p170 = scmp.ne.s32.totalorder %s159, %s162
      %p171 = scmp.eq.s32.totalorder %s23, 1
      %p172 = por %p170, %p171
      %p173 = scmp.ne.s32.totalorder %s162, %s163
      %p174 = scmp.eq.s32.totalorder %s23, 0
      %p175 = por %p173, %p174
      %p176 = scmp.ne.s32.totalorder %s162, %s163
      %p177 = scmp.eq.s32.totalorder %s24, 1
      %p178 = por %p176, %p177
      %p180 = scmp.ne.s32.totalorder %s163, %s179
      %p181 = scmp.eq.s32.totalorder %s24, 0
      %p182 = por %p180, %p181
      %p183 = scmp.le.s32.totalorder 1, %s18
      %p184 = scmp.lt.s32.totalorder %s18, 3
      %p185 = pnand %p183, %p184
      %p186 = pneg %p185
      // Predicated region
      $region9: #{tpu_custom_call.1} parent=5 // pred_check
        _
      $region10: #{tpu_custom_call.1} parent=5 // pred_check_branch
        %188 = sbr.rel (%p185) target = $region12
      $region11: #{tpu_custom_call.1} parent=5 // pred_region
        %s189 = ssub.s32 %s18, 1
        // Predicated region
        $region13: #{tpu_custom_call.1} parent=11 // pred_check
          %p190 = pneg %p65
        $region14: #{tpu_custom_call.1} parent=11 // pred_check_branch
          %192 = sbr.rel (%p190) target = $region16
        $region15: #{tpu_custom_call.1} parent=11 // pred_region
          _
        $region16: #{tpu_custom_call.1} parent=11 // pred_fallthru
          _
        // Predicated region
        $region17: #{tpu_custom_call.1} parent=11 // pred_check
          %p193 = pneg %p86
        $region18: #{tpu_custom_call.1} parent=11 // pred_check_branch
          %195 = sbr.rel (%p193) target = $region20
        $region19: #{tpu_custom_call.1} parent=11 // pred_region
          _
        $region20: #{tpu_custom_call.1} parent=11 // pred_fallthru
          _
        // Predicated region
        $region21: #{tpu_custom_call.1} parent=11 // pred_check
          %p196 = pneg %p107
        $region22: #{tpu_custom_call.1} parent=11 // pred_check_branch
          %198 = sbr.rel (%p196) target = $region24
        $region23: #{tpu_custom_call.1} parent=11 // pred_region
          _
        $region24: #{tpu_custom_call.1} parent=11 // pred_fallthru
          _
        // Predicated region
        $region25: #{tpu_custom_call.1} parent=11 // pred_check
          %p199 = pneg %p128
        $region26: #{tpu_custom_call.1} parent=11 // pred_check_branch
          %201 = sbr.rel (%p199) target = $region28
        $region27: #{tpu_custom_call.1} parent=11 // pred_region
          _
        $region28: #{tpu_custom_call.1} parent=11 // pred_fallthru
          _
        // Predicated region
        $region29: #{tpu_custom_call.1} parent=11 // pred_check
          %p202 = pneg %p149
        $region30: #{tpu_custom_call.1} parent=11 // pred_check_branch
          %204 = sbr.rel (%p202) target = $region32
        $region31: #{tpu_custom_call.1} parent=11 // pred_region
          _
        $region32: #{tpu_custom_call.1} parent=11 // pred_fallthru
          _
      $region12: #{tpu_custom_call.1} parent=5 // pred_fallthru
        _
      %p205 = scmp.lt.s32.totalorder %s18, 2
      // Predicated region
      $region33: #{tpu_custom_call.1} parent=5 // pred_check
        %p206 = pneg %p205
      $region34: #{tpu_custom_call.1} parent=5 // pred_check_branch
        %208 = sbr.rel (%p206) target = $region36
      $region35: #{tpu_custom_call.1} parent=5 // pred_region
        // Predicated region
        $region37: #{tpu_custom_call.1} parent=35 // pred_check
          %p209 = pneg %p38
        $region38: #{tpu_custom_call.1} parent=35 // pred_check_branch
          %211 = sbr.rel (%p209) target = $region40
        $region39: #{tpu_custom_call.1} parent=35 // pred_region
          %s212 = sand.u32 %s28, 1
          %s213 = scalar_lea.sflag [#allocation6], %s212
          %s214 = sand.u32 %s28, 1
          %s215 = smul.addr %s214, 8
          %s216 = scalar_lea.vmem [#allocation5], %s215
          %218 = vsyncadd %s213, 0
          %s219 = smul.addr %s18, 2
          %s220 = smul.addr %s219, 4
          %s221 = scalar_lea.hbm %s0, %s220
          %s223 = sshll.u32 %s221, 4
          %s224 = int_to_ptr.hbm [resolvable:$true] %s223
          %s225 = sshll.u32 %s216, 4
          %s226 = int_to_ptr.vmem [resolvable:$true] %s225
          %228 = dma.hbm_to_vmem [thread:$0]  %s224, 128, %s226, %s213
        $region40: #{tpu_custom_call.1} parent=35 // pred_fallthru
          _
      $region36: #{tpu_custom_call.1} parent=5 // pred_fallthru
        _
      %p229 = scmp.le.s32.totalorder 1, %s18
      %p230 = scmp.lt.s32.totalorder %s18, 3
      %p231 = pnand %p229, %p230
      %p232 = pneg %p231
      // Predicated region
      $region41: #{tpu_custom_call.1} parent=5 // pred_check
        _
      $region42: #{tpu_custom_call.1} parent=5 // pred_check_branch
        %234 = sbr.rel (%p231) target = $region44
      $region43: #{tpu_custom_call.1} parent=5 // pred_region
        %s235 = ssub.s32 %s18, 1
        %s236 = sand.u32 %s31, 1
        %s237 = scalar_lea.sflag [#allocation6], %s236
        %s238 = sand.u32 %s31, 1
        %s239 = smul.addr %s238, 8
        %s240 = scalar_lea.vmem [#allocation5], %s239
        // Predicated region
        $region45: #{tpu_custom_call.1} parent=43 // pred_check
          %p241 = pneg %p44
        $region46: #{tpu_custom_call.1} parent=43 // pred_check_branch
          %243 = sbr.rel (%p241) target = $region48
        $region47: #{tpu_custom_call.1} parent=43 // pred_region
          %245 = dma.done %s237, 128
        $region48: #{tpu_custom_call.1} parent=43 // pred_fallthru
          _
        %s246 = sand.u32 %s31, 1
        %s247 = scalar_lea.sflag [#allocation6], %s246
        %s248 = sand.u32 %s31, 1
        %s249 = smul.addr %s248, 8
        %s250 = scalar_lea.vmem [#allocation5], %s249
        %p251 = pneg %p44
        %p252 = pneg %p41
        %p253 = pneg %p65
        %p254 = pneg %p62
        %p255 = pneg %p86
        %p256 = pneg %p83
        %p257 = pneg %p107
        %p258 = pneg %p104
        %p259 = pneg %p128
        %p260 = pneg %p125
        %p261 = pneg %p149
        %p262 = pneg %p146
        %p263 = pneg %p175
        %p264 = pneg %p172
        %s265 = sand.u32 %s162, 1
        %s266 = scalar_lea.sflag [#allocation7], %s265
        %s267 = sand.u32 %s162, 1
        %s268 = smul.addr %s267, 8
        %s269 = scalar_lea.vmem [#allocation8], %s268
        %271 = vst [vmem:[#allocation2] sm:$0xff] 0.0
        %vm272 = vcmask 568320
        %273 = vst.msk [vmem:[#allocation2 + $0x8] sm:$0xf] %vm272, 0.0
        %v274 = vld [vmem:[%s240] sm:$0xf]
        %276 = vrot.lane.b32.xlu0 %v274, 19
        %v277 = vpop.permute.xlu0 %276
        %vm279 = vcmask 281752
        %280 = vst.msk [vmem:[#allocation2] sm:$0xf] %vm279, %v277
        %v281 = vld [vmem:[%s240] sm:$0xf]
        %283 = vrot.lane.b32.xlu0 %v281, 21
        %v284 = vpop.permute.xlu0 %283
        %vm286 = vcmask 429352
        %287 = vst.msk [vmem:[#allocation2] sm:$0xf] %vm286, %v284
        %v288 = vld [vmem:[%s240] sm:$0xf]
        %290 = vrot.lane.b32.xlu0 %v288, 23
        %v291 = vpop.permute.xlu0 %290
        %vm293 = vcmask 576952
        %294 = vst.msk [vmem:[#allocation2] sm:$0xf] %vm293, %v291
        %v295 = vld [vmem:[%s240] sm:$0xf]
        %297 = vrot.lane.b32.xlu0 %v295, 25
        %v298 = vpop.permute.xlu0 %297
        %vm300 = vcmask 724552
        %301 = vst.msk [vmem:[#allocation2] sm:$0xf] %vm300, %v298
        %v302 = vld [vmem:[%s240] sm:$0xf]
        %304 = vrot.lane.b32.xlu0 %v302, 27
        %v305 = vpop.permute.xlu0 %304
        %vm307 = vcmask 872152
        %308 = vst.msk [vmem:[#allocation2] sm:$0xf] %vm307, %v305
        %v309 = vld [vmem:[%s240] sm:$0xf]
        %311 = vrot.lane.b32.xlu0 %v309, 29
        %v312 = vpop.permute.xlu0 %311
        %vm314 = vcmask 1019752
        %315 = vst.msk [vmem:[#allocation2] sm:$0xf] %vm314, %v312
        %v316 = vld [vmem:[%s240] sm:$0xf]
        %318 = vrot.lane.b32.xlu0 %v316, 31
        %v319 = vpop.permute.xlu0 %318
        %v320 = vrot.slane %v319, 4
        %vm321 = vcmask 252928
        %v322 = vsel %vm321, %v320, %v319
        %vm324 = vcmask 1044472
        %vm325 = vcmask 121860
        %vm326 = vmor %vm325, %vm324
        %327 = vst.msk [vmem:[#allocation2] sm:$0xff] %vm326, %v322
        %v328 = vld [vmem:[%s240] sm:$0xf]
        %330 = vrot.lane.b32.xlu0 %v328, 33
        %v331 = vpop.permute.xlu0 %330
        %vm333 = vcmask 265352
        %334 = vst.msk [vmem:[#allocation2 + $0x4] sm:$0xf] %vm333, %v331
        %v335 = vld [vmem:[%s240 + $0x4] sm:$0xf]
        %337 = vrot.lane.b32.xlu0 %v335, 35
        %v338 = vpop.permute.xlu0 %337
        %vm340 = vcmask 412952
        %341 = vst.msk [vmem:[#allocation2 + $0x4] sm:$0xf] %vm340, %v338
        %v342 = vld [vmem:[%s240 + $0x4] sm:$0xf]
        %344 = vrot.lane.b32.xlu0 %v342, 37
        %v345 = vpop.permute.xlu0 %344
        %vm347 = vcmask 560552
        %348 = vst.msk [vmem:[#allocation2 + $0x4] sm:$0xf] %vm347, %v345
        %v349 = vld [vmem:[%s240 + $0x4] sm:$0xf]
        %351 = vrot.lane.b32.xlu0 %v349, 39
        %v352 = vpop.permute.xlu0 %351
        %vm354 = vcmask 708152
        %355 = vst.msk [vmem:[#allocation2 + $0x4] sm:$0xf] %vm354, %v352
        %v356 = vld [vmem:[%s240 + $0x4] sm:$0xf]
        %358 = vrot.lane.b32.xlu0 %v356, 41
        %v359 = vpop.permute.xlu0 %358
        %vm361 = vcmask 855752
        %362 = vst.msk [vmem:[#allocation2 + $0x4] sm:$0xf] %vm361, %v359
        %v363 = vld [vmem:[%s240 + $0x4] sm:$0xf]
        %365 = vrot.lane.b32.xlu0 %v363, 43
        %v366 = vpop.permute.xlu0 %365
        %vm368 = vcmask 1003352
        %369 = vst.msk [vmem:[#allocation2 + $0x4] sm:$0xf] %vm368, %v366
        %v370 = vld [vmem:[%s240 + $0x4] sm:$0xf]
        %372 = vrot.lane.b32.xlu0 %v370, 45
        %v373 = vpop.permute.xlu0 %372
        %v374 = vrot.slane %v373, 4
        %vm375 = vcmask 367616
        %v376 = vsel %vm375, %v374, %v373
        %vm378 = vcmask 1044456
        %vm379 = vcmask 105476
        %vm380 = vmor %vm379, %vm378
        %381 = vst.msk [vmem:[#allocation2 + $0x4] sm:$0xff] %vm380, %v376
        %v382 = vld [vmem:[%s240 + $0x4] sm:$0xf]
        %384 = vrot.lane.b32.xlu0 %v382, 47
        %v385 = vpop.permute.xlu0 %384
        %vm387 = vcmask 248952
        %388 = vst.msk [vmem:[#allocation2 + $0x8] sm:$0xf] %vm387, %v385
        %v389 = vld [vmem:[%s240 + $0x4] sm:$0xf]
        %391 = vrot.lane.b32.xlu0 %v389, 49
        %v392 = vpop.permute.xlu0 %391
        %vm394 = vcmask 396552
        %395 = vst.msk [vmem:[#allocation2 + $0x8] sm:$0xf] %vm394, %v392
        %v396 = vld [vmem:[%s3] sm:$0xf]
        %v397 = vld [vmem:[%s4] sm:$0xf]
        %v398 = vld [vmem:[%s5] sm:$0x7]
        %v399 = vld [vmem:[#allocation2] sm:$0xff]
        %v400 = vld [vmem:[#allocation2 + $0x8] sm:$0xf]
        %403 = vst [vmem:[#allocation1] ss:$2 sm:$0xff] %v399
        %s404 = scalar_lea.vmem [#allocation1], 16
        %405 = vst [vmem:[%s404] ss:$2 sm:$0xff] %v400
        %v406 = vld.sshfl [vmem:[#allocation1] sm:$0xff pattern:$0x75316420]
        %v407 = vld.sshfl [vmem:[#allocation1 + $0x8] sm:$0xff pattern:$0x75316420]
        %v408 = vld.sshfl [vmem:[#allocation1 + $0x10] sm:$0xff pattern:$0x75316420]
        %v412 = vpack.c.bf16 %v407, %v406
        %v413 = vpack.c.bf16 %v408, %v408
        %414 = vst [vmem:[#allocation4] sm:$0x33] %v412
        %vm415 = vcmask 254976
        %416 = vst.msk [vmem:[#allocation4 + $0x8] sm:$0x3] %vm415, %v413
        %v417 = vld [vmem:[#allocation2] sm:$0xff]
        %v418 = vld [vmem:[#allocation2 + $0x8] sm:$0xf]
        %421 = vst [vmem:[#allocation1] ss:$2 sm:$0xff] %v417
        %s422 = scalar_lea.vmem [#allocation1], 16
        %423 = vst [vmem:[%s422] ss:$2 sm:$0xff] %v418
        %v424 = vld.sshfl [vmem:[#allocation1] sm:$0xff pattern:$0x75316420]
        %v425 = vld.sshfl [vmem:[#allocation1 + $0x8] sm:$0xff pattern:$0x75316420]
        %v426 = vld.sshfl [vmem:[#allocation1 + $0x10] sm:$0xff pattern:$0x75316420]
        %v430 = vpack.c.bf16 %v425, %v424
        %v431 = vpack.c.bf16 %v426, %v426
        %v434 = vrot.slane %v430, 6
        %v435 = vrot.slane %v431, 6
        %436 = vrot.lane.b32.xlu0 %v434, 127
        %v437 = vpop.permute.xlu0 %436
        %438 = vrot.lane.b32.xlu0 %v435, 127
        %v439 = vpop.permute.xlu0 %438
        %v440 = vrot.slane %v437, 4
        %v441 = vrot.slane %v439, 4
        %vm442 = vcmask 1043456
        %v443 = vsel %vm442, %v440, %v441
        %vm444 = vcmask 1039360
        %v445 = vsel %vm444, %v437, %v443
        %448 = vst [vmem:[#allocation4] sm:$0xcc] %v445
        %vm449 = vcmask 257026
        %450 = vst.msk [vmem:[#allocation4 + $0x8] sm:$0xc] %vm449, %v439
        %v451 = vld [vmem:[#allocation2] sm:$0xff]
        %v452 = vld [vmem:[#allocation2 + $0x8] sm:$0xf]
        %455 = vst [vmem:[#allocation1] ss:$2 sm:$0xff] %v451
        %s456 = scalar_lea.vmem [#allocation1], 16
        %457 = vst [vmem:[%s456] ss:$2 sm:$0xff] %v452
        %v458 = vld.sshfl [vmem:[#allocation1] sm:$0xff pattern:$0x75316420]
        %v459 = vld.sshfl [vmem:[#allocation1 + $0x8] sm:$0xff pattern:$0x75316420]
        %v460 = vld.sshfl [vmem:[#allocation1 + $0x10] sm:$0xff pattern:$0x75316420]
        %v464 = vpack.c.bf16 %v459, %v458
        %v465 = vpack.c.bf16 %v460, %v460
        %468 = vrot.lane.b32.xlu0 %v464, 126
        %v469 = vpop.permute.xlu0 %468
        %470 = vrot.lane.b32.xlu0 %v465, 126
        %v471 = vpop.permute.xlu0 %470
        %v472 = vrot.slane %v469, 4
        %v473 = vrot.slane %v471, 4
        %v474 = vsel %vm442, %v472, %v473
        %vm475 = vcmask 1031168
        %v476 = vsel %vm475, %v469, %v474
        %479 = vst [vmem:[#allocation4 + $0xc] sm:$0x33] %v476
        %480 = vst.msk [vmem:[#allocation4 + $0x14] sm:$0x3] %vm415, %v471
        %v481 = vld [vmem:[#allocation2] sm:$0xff]
        %v482 = vld [vmem:[#allocation2 + $0x8] sm:$0xf]
        %485 = vst [vmem:[#allocation1] ss:$2 sm:$0xff] %v481
        %s486 = scalar_lea.vmem [#allocation1], 16
        %487 = vst [vmem:[%s486] ss:$2 sm:$0xff] %v482
        %v488 = vld.sshfl [vmem:[#allocation1] sm:$0xff pattern:$0x75316420]
        %v489 = vld.sshfl [vmem:[#allocation1 + $0x8] sm:$0xff pattern:$0x75316420]
        %v490 = vld.sshfl [vmem:[#allocation1 + $0x10] sm:$0xff pattern:$0x75316420]
        %v494 = vpack.c.bf16 %v489, %v488
        %v495 = vpack.c.bf16 %v490, %v490
        %v498 = vrot.slane %v494, 6
        %v499 = vrot.slane %v495, 6
        %500 = vrot.lane.b32.xlu0 %v498, 110
        %v501 = vpop.permute.xlu0 %500
        %502 = vrot.lane.b32.xlu0 %v499, 110
        %v503 = vpop.permute.xlu0 %502
        %v504 = vrot.slane %v501, 4
        %v505 = vrot.slane %v503, 4
        %v506 = vsel %vm442, %v504, %v505
        %vm507 = vcmask 900096
        %v508 = vsel %vm507, %v501, %v506
        %511 = vst [vmem:[#allocation4 + $0xc] sm:$0xcc] %v508
        %512 = vst.msk [vmem:[#allocation4 + $0x14] sm:$0xc] %vm449, %v503
        %v513 = vld [vmem:[#allocation2] sm:$0xff]
        %v514 = vld [vmem:[#allocation2 + $0x8] sm:$0xf]
        %517 = vst [vmem:[#allocation1] ss:$2 sm:$0xff] %v513
        %s518 = scalar_lea.vmem [#allocation1], 16
        %519 = vst [vmem:[%s518] ss:$2 sm:$0xff] %v514
        %v520 = vld.sshfl [vmem:[#allocation1] sm:$0xff pattern:$0x75316420]
        %v521 = vld.sshfl [vmem:[#allocation1 + $0x8] sm:$0xff pattern:$0x75316420]
        %v522 = vld.sshfl [vmem:[#allocation1 + $0x10] sm:$0xff pattern:$0x75316420]
        %v526 = vpack.c.bf16 %v521, %v520
        %v527 = vpack.c.bf16 %v522, %v522
        %530 = vrot.lane.b32.xlu0 %v526, 109
        %v531 = vpop.permute.xlu0 %530
        %532 = vrot.lane.b32.xlu0 %v527, 109
        %v533 = vpop.permute.xlu0 %532
        %v534 = vrot.slane %v531, 4
        %v535 = vrot.slane %v533, 4
        %v536 = vsel %vm442, %v534, %v535
        %vm537 = vcmask 891904
        %v538 = vsel %vm537, %v531, %v536
        %541 = vst [vmem:[#allocation4 + $0x18] sm:$0x33] %v538
        %542 = vst.msk [vmem:[#allocation4 + $0x20] sm:$0x3] %vm415, %v533
        %v543 = vld [vmem:[#allocation2] sm:$0xff]
        %v544 = vld [vmem:[#allocation2 + $0x8] sm:$0xf]
        %547 = vst [vmem:[#allocation1] ss:$2 sm:$0xff] %v543
        %s548 = scalar_lea.vmem [#allocation1], 16
        %549 = vst [vmem:[%s548] ss:$2 sm:$0xff] %v544
        %v550 = vld.sshfl [vmem:[#allocation1] sm:$0xff pattern:$0x75316420]
        %v551 = vld.sshfl [vmem:[#allocation1 + $0x8] sm:$0xff pattern:$0x75316420]
        %v552 = vld.sshfl [vmem:[#allocation1 + $0x10] sm:$0xff pattern:$0x75316420]
        %v556 = vpack.c.bf16 %v551, %v550
        %v557 = vpack.c.bf16 %v552, %v552
        %v560 = vrot.slane %v556, 6
        %v561 = vrot.slane %v557, 6
        %562 = vrot.lane.b32.xlu0 %v560, 108
        %v563 = vpop.permute.xlu0 %562
        %564 = vrot.lane.b32.xlu0 %v561, 108
        %v565 = vpop.permute.xlu0 %564
        %v566 = vrot.slane %v563, 4
        %v567 = vrot.slane %v565, 4
        %v568 = vsel %vm442, %v566, %v567
        %vm569 = vcmask 883712
        %v570 = vsel %vm569, %v563, %v568
        %573 = vst [vmem:[#allocation4 + $0x18] sm:$0xcc] %v570
        %574 = vst.msk [vmem:[#allocation4 + $0x20] sm:$0xc] %vm449, %v565
        %v575 = vld [vmem:[#allocation2] sm:$0xff]
        %v576 = vld [vmem:[#allocation2 + $0x8] sm:$0xf]
        %579 = vst [vmem:[#allocation1] ss:$2 sm:$0xff] %v575
        %s580 = scalar_lea.vmem [#allocation1], 16
        %581 = vst [vmem:[%s580] ss:$2 sm:$0xff] %v576
        %v582 = vld.sshfl [vmem:[#allocation1] sm:$0xff pattern:$0x75316420]
        %v583 = vld.sshfl [vmem:[#allocation1 + $0x8] sm:$0xff pattern:$0x75316420]
        %v584 = vld.sshfl [vmem:[#allocation1 + $0x10] sm:$0xff pattern:$0x75316420]
        %v588 = vpack.c.bf16 %v583, %v582
        %v589 = vpack.c.bf16 %v584, %v584
        %592 = vrot.lane.b32.xlu0 %v588, 92
        %v593 = vpop.permute.xlu0 %592
        %594 = vrot.lane.b32.xlu0 %v589, 92
        %v595 = vpop.permute.xlu0 %594
        %v596 = vrot.slane %v593, 4
        %v597 = vrot.slane %v595, 4
        %v598 = vsel %vm442, %v596, %v597
        %vm599 = vcmask 752640
        %v600 = vsel %vm599, %v593, %v598
        %603 = vst [vmem:[#allocation4 + $0x24] sm:$0x33] %v600
        %604 = vst.msk [vmem:[#allocation4 + $0x2c] sm:$0x3] %vm415, %v595
        %v605 = vld [vmem:[#allocation2] sm:$0xff]
        %v606 = vld [vmem:[#allocation2 + $0x8] sm:$0xf]
        %609 = vst [vmem:[#allocation1] ss:$2 sm:$0xff] %v605
        %s610 = scalar_lea.vmem [#allocation1], 16
        %611 = vst [vmem:[%s610] ss:$2 sm:$0xff] %v606
        %v612 = vld.sshfl [vmem:[#allocation1] sm:$0xff pattern:$0x75316420]
        %v613 = vld.sshfl [vmem:[#allocation1 + $0x8] sm:$0xff pattern:$0x75316420]
        %v614 = vld.sshfl [vmem:[#allocation1 + $0x10] sm:$0xff pattern:$0x75316420]
        %v618 = vpack.c.bf16 %v613, %v612
        %v619 = vpack.c.bf16 %v614, %v614
        %v622 = vrot.slane %v618, 6
        %v623 = vrot.slane %v619, 6
        %624 = vrot.lane.b32.xlu0 %v622, 91
        %v625 = vpop.permute.xlu0 %624
        %626 = vrot.lane.b32.xlu0 %v623, 91
        %v627 = vpop.permute.xlu0 %626
        %v628 = vrot.slane %v625, 4
        %v629 = vrot.slane %v627, 4
        %v630 = vsel %vm442, %v628, %v629
        %vm631 = vcmask 744448
        %v632 = vsel %vm631, %v625, %v630
        %635 = vst [vmem:[#allocation4 + $0x24] sm:$0xcc] %v632
        %636 = vst.msk [vmem:[#allocation4 + $0x2c] sm:$0xc] %vm449, %v627
        %v637 = vld [vmem:[#allocation2] sm:$0xff]
        %v638 = vld [vmem:[#allocation2 + $0x8] sm:$0xf]
        %641 = vst [vmem:[#allocation1] ss:$2 sm:$0xff] %v637
        %s642 = scalar_lea.vmem [#allocation1], 16
        %643 = vst [vmem:[%s642] ss:$2 sm:$0xff] %v638
        %v644 = vld.sshfl [vmem:[#allocation1] sm:$0xff pattern:$0x75316420]
        %v645 = vld.sshfl [vmem:[#allocation1 + $0x8] sm:$0xff pattern:$0x75316420]
        %v646 = vld.sshfl [vmem:[#allocation1 + $0x10] sm:$0xff pattern:$0x75316420]
        %v650 = vpack.c.bf16 %v645, %v644
        %v651 = vpack.c.bf16 %v646, %v646
        %654 = vrot.lane.b32.xlu0 %v650, 90
        %v655 = vpop.permute.xlu0 %654
        %656 = vrot.lane.b32.xlu0 %v651, 90
        %v657 = vpop.permute.xlu0 %656
        %v658 = vrot.slane %v655, 4
        %v659 = vrot.slane %v657, 4
        %v660 = vsel %vm442, %v658, %v659
        %vm661 = vcmask 736256
        %v662 = vsel %vm661, %v655, %v660
        %665 = vst [vmem:[#allocation4 + $0x30] sm:$0x33] %v662
        %666 = vst.msk [vmem:[#allocation4 + $0x38] sm:$0x3] %vm415, %v657
        %v667 = vld [vmem:[%s1] sm:$0x3]
        %v668 = vld [vmem:[#allocation4] sm:$0xff]
        %v669 = vld [vmem:[#allocation4 + $0x8] sm:$0xf]
        %v670 = vld [vmem:[#allocation4 + $0xc] sm:$0xff]
        %v671 = vld [vmem:[#allocation4 + $0x14] sm:$0xf]
        %v672 = vld [vmem:[#allocation4 + $0x18] sm:$0xff]
        %v673 = vld [vmem:[#allocation4 + $0x20] sm:$0xf]
        %v674 = vld [vmem:[#allocation4 + $0x24] sm:$0xff]
        %v675 = vld [vmem:[#allocation4 + $0x2c] sm:$0xf]
        %v676 = vld [vmem:[#allocation4 + $0x30] sm:$0x33]
        %v677 = vld [vmem:[#allocation4 + $0x38] sm:$0x3]
        %679 = vset.pattern.permute.xlu0 0
        %680 = vperm.xlu0 %679, %v396
        %v681 = vpop.permute.xlu0 %680
        %v693 = vunpack.c.l.b16 %v668
        %v694 = vunpack.c.h.b16 %v668
        %v695 = vunpack.c.l.b16 %v669
        %v696 = vunpack.c.l.b16 %v670
        %v697 = vunpack.c.h.b16 %v670
        %v698 = vunpack.c.l.b16 %v671
        %v699 = vunpack.c.l.b16 %v672
        %v700 = vunpack.c.h.b16 %v672
        %v701 = vunpack.c.l.b16 %v673
        %v702 = vunpack.c.l.b16 %v674
        %v703 = vunpack.c.h.b16 %v674
        %v704 = vunpack.c.l.b16 %v675
        %v705 = vunpack.c.l.b16 %v676
        %v706 = vunpack.c.h.b16 %v676
        %v707 = vunpack.c.l.b16 %v677
        %v708 = vpack.c.b16 %v696, %v693
        %v709 = vpack.c.b16 %v697, %v694
        %v710 = vpack.c.b16 %v698, %v695
        %v711 = vpack.c.b16 %v702, %v699
        %v712 = vpack.c.b16 %v703, %v700
        %v713 = vpack.c.b16 %v704, %v701
        %v714 = vpack.c.b16 %v705, %v705
        %v715 = vpack.c.b16 %v706, %v706
        %v716 = vpack.c.b16 %v707, %v707
        %vm723 = vcmask 293888
        %v725 = vsel %vm723, %v667, 0
        %vm727 = vcmask 1041408
        %v729 = vsel %vm727, %v714, 0
        %v732 = vsel %vm727, %v715, 0
        %v735 = vsel %vm727, %v716, 0
        %737 = vmatpush.bf16.msra.mxu0 0
        %738 = vmatpush.bf16.msra.mxu0 0
        %739 = vmatpush.bf16.msra.mxu0 0
        %740 = vmatpush.bf16.msra.mxu0 0
        %741 = vmatpush.bf16.msra.mxu0 0
        %742 = vmatpush.bf16.msra.mxu0 %v729
        %743 = vmatpush.bf16.msra.mxu0 %v711
        %744 = vmatpush.bf16.msra.mxu0 %v708
        %745 = vmatmul.bf16.gmra.mxu0 %v725
        %v746 = vpop.f32.mrf.mxu0
        %v747 = vadd.f32 %v681, %v746
        %v748 = vpop.f32.mrf.mxu0
        %749 = vdwg.mxu0
        %750 = vmatpush.bf16.msra.mxu0 0
        %751 = vmatpush.bf16.msra.mxu0 0
        %752 = vmatpush.bf16.msra.mxu0 0
        %753 = vmatpush.bf16.msra.mxu0 0
        %754 = vmatpush.bf16.msra.mxu0 0
        %755 = vmatpush.bf16.msra.mxu0 %v732
        %756 = vmatpush.bf16.msra.mxu0 %v712
        %757 = vmatpush.bf16.msra.mxu0 %v709
        %758 = vmatmul.bf16.gmra.mxu0 %v725
        %v759 = vpop.f32.mrf.mxu0
        %v760 = vadd.f32 %v681, %v759
        %v761 = vpop.f32.mrf.mxu0
        %762 = vdwg.mxu0
        %763 = vmatpush.bf16.msra.mxu0 0
        %764 = vmatpush.bf16.msra.mxu0 0
        %765 = vmatpush.bf16.msra.mxu0 0
        %766 = vmatpush.bf16.msra.mxu0 0
        %767 = vmatpush.bf16.msra.mxu0 0
        %768 = vmatpush.bf16.msra.mxu0 %v735
        %769 = vmatpush.bf16.msra.mxu0 %v713
        %770 = vmatpush.bf16.msra.mxu0 %v710
        %771 = vmatmul.bf16.gmra.mxu0 %v725
        %v772 = vpop.f32.mrf.mxu0
        %v773 = vadd.f32 %v681, %v772
        %v774 = vpop.f32.mrf.mxu0
        %775 = vdwg.mxu0
        %v776 = vmax.f32 %v747, 0.0
        %v777 = vmax.f32 %v760, 0.0
        %v778 = vmax.f32 %v773, 0.0
        %v780 = vperm.slane %v398, 0
        %v781 = vperm.slane %v398, 1
        %v782 = vperm.slane %v398, 2
        %v786 = vmul.f32 %v776, %v780
        %v787 = vmul.f32 %v777, %v781
        %v788 = vmul.f32 %v778, %v782
        %vm789 = vcmask 1043458
        %vm790 = vmor %vm789, %vm727
        %vm791 = vcmask 570372
        %vm792 = vmor %vm791, %vm790
        %793 = vst.msk [vmem:[#allocation3] sm:$0x3f] %vm792, 0
        %v794 = vpack.c.bf16 %v787, %v786
        %v795 = vpack.c.bf16 %v788, %v788
        %v798 = vrot.slane %v794, 2
        %v799 = vrot.slane %v795, 4
        %v800 = vrot.slane %v795, 6
        %v803 = vsel %vm727, %v794, %v798
        %vm804 = vcmask 1045508
        %v807 = vsel %vm804, %v799, %v800
        %vm808 = vcmask 1043456
        %v809 = vsel %vm808, %v803, %v807
        %811 = vrot.lane.b32.xlu0 %v809, 19
        %v812 = vpop.permute.xlu0 %811
        %v813 = vrot.slane %v812, 6
        %vm814 = vcmask 154624
        %v815 = vsel %vm814, %v813, %v812
        %vm817 = vcmask 1041560
        %vm818 = vmor %vm789, %vm817
        %vm819 = vcmask 414724
        %vm820 = vmor %vm819, %vm818
        %821 = vst.msk [vmem:[#allocation3] sm:$0x3f] %vm820, %v815
        %v822 = vld [vmem:[#allocation3] sm:$0x3f]
        %824 = vst [vmem:[#allocation1] ss:$2 sm:$0xff] %v822
        %v825 = vld.sshfl [vmem:[#allocation1] sm:$0xff pattern:$0x75643120]
        %v826 = vld.sshfl [vmem:[#allocation1 + $0x8] sm:$0xff pattern:$0x75643120]
        %829 = vst [vmem:[#allocation4] sm:$0x33] %v825
        %830 = vst.msk [vmem:[#allocation4 + $0x8] sm:$0x3] %vm415, %v826
        %v831 = vld [vmem:[#allocation3] sm:$0x3f]
        %s833 = scalar_lea.vmem [#allocation1], 1
        %834 = vst [vmem:[%s833] ss:$2 sm:$0xff] %v831
        %v835 = vld.sshfl [vmem:[#allocation1] sm:$0xff pattern:$0x75643120]
        %v837 = vld.sshfl [vmem:[#allocation1 + $0x8] sm:$0xff pattern:$0x75643120]
        %839 = vrot.lane.b32.xlu0 %v835, 127
        %v840 = vpop.permute.xlu0 %839
        %841 = vrot.lane.b32.xlu0 %v837, 127
        %v842 = vpop.permute.xlu0 %841
        %v843 = vrot.slane %v840, 4
        %v844 = vrot.slane %v842, 4
        %v845 = vsel %vm442, %v843, %v844
        %v846 = vsel %vm444, %v840, %v845
        %849 = vst [vmem:[#allocation4] sm:$0xcc] %v846
        %850 = vst.msk [vmem:[#allocation4 + $0x8] sm:$0xc] %vm449, %v842
        %v851 = vld [vmem:[#allocation3] sm:$0x3f]
        %853 = vst [vmem:[#allocation1] ss:$2 sm:$0xff] %v851
        %v854 = vld.sshfl [vmem:[#allocation1] sm:$0xff pattern:$0x75643120]
        %v856 = vld.sshfl [vmem:[#allocation1 + $0x8] sm:$0xff pattern:$0x75643120]
        %858 = vrot.lane.b32.xlu0 %v854, 126
        %v859 = vpop.permute.xlu0 %858
        %860 = vrot.lane.b32.xlu0 %v856, 126
        %v861 = vpop.permute.xlu0 %860
        %v862 = vrot.slane %v859, 4
        %v863 = vrot.slane %v861, 4
        %v864 = vsel %vm442, %v862, %v863
        %v865 = vsel %vm475, %v859, %v864
        %868 = vst [vmem:[#allocation4 + $0xc] sm:$0x33] %v865
        %869 = vst.msk [vmem:[#allocation4 + $0x14] sm:$0x3] %vm415, %v861
        %v870 = vld [vmem:[#allocation3] sm:$0x3f]
        %s872 = scalar_lea.vmem [#allocation1], 1
        %873 = vst [vmem:[%s872] ss:$2 sm:$0xff] %v870
        %v874 = vld.sshfl [vmem:[#allocation1] sm:$0xff pattern:$0x75643120]
        %v876 = vld.sshfl [vmem:[#allocation1 + $0x8] sm:$0xff pattern:$0x75643120]
        %878 = vrot.lane.b32.xlu0 %v874, 110
        %v879 = vpop.permute.xlu0 %878
        %880 = vrot.lane.b32.xlu0 %v876, 110
        %v881 = vpop.permute.xlu0 %880
        %v882 = vrot.slane %v879, 4
        %v883 = vrot.slane %v881, 4
        %v884 = vsel %vm442, %v882, %v883
        %v885 = vsel %vm507, %v879, %v884
        %888 = vst [vmem:[#allocation4 + $0xc] sm:$0xcc] %v885
        %889 = vst.msk [vmem:[#allocation4 + $0x14] sm:$0xc] %vm449, %v881
        %v890 = vld [vmem:[#allocation3] sm:$0x3f]
        %892 = vst [vmem:[#allocation1] ss:$2 sm:$0xff] %v890
        %v893 = vld.sshfl [vmem:[#allocation1] sm:$0xff pattern:$0x75643120]
        %v895 = vld.sshfl [vmem:[#allocation1 + $0x8] sm:$0xff pattern:$0x75643120]
        %897 = vrot.lane.b32.xlu0 %v893, 109
        %v898 = vpop.permute.xlu0 %897
        %899 = vrot.lane.b32.xlu0 %v895, 109
        %v900 = vpop.permute.xlu0 %899
        %v901 = vrot.slane %v898, 4
        %v902 = vrot.slane %v900, 4
        %v903 = vsel %vm442, %v901, %v902
        %v904 = vsel %vm537, %v898, %v903
        %907 = vst [vmem:[#allocation4 + $0x18] sm:$0x33] %v904
        %908 = vst.msk [vmem:[#allocation4 + $0x20] sm:$0x3] %vm415, %v900
        %v909 = vld [vmem:[#allocation3] sm:$0x3f]
        %s911 = scalar_lea.vmem [#allocation1], 1
        %912 = vst [vmem:[%s911] ss:$2 sm:$0xff] %v909
        %v913 = vld.sshfl [vmem:[#allocation1] sm:$0xff pattern:$0x75643120]
        %v915 = vld.sshfl [vmem:[#allocation1 + $0x8] sm:$0xff pattern:$0x75643120]
        %917 = vrot.lane.b32.xlu0 %v913, 108
        %v918 = vpop.permute.xlu0 %917
        %919 = vrot.lane.b32.xlu0 %v915, 108
        %v920 = vpop.permute.xlu0 %919
        %v921 = vrot.slane %v918, 4
        %v922 = vrot.slane %v920, 4
        %v923 = vsel %vm442, %v921, %v922
        %v924 = vsel %vm569, %v918, %v923
        %927 = vst [vmem:[#allocation4 + $0x18] sm:$0xcc] %v924
        %928 = vst.msk [vmem:[#allocation4 + $0x20] sm:$0xc] %vm449, %v920
        %v929 = vld [vmem:[#allocation3] sm:$0x3f]
        %931 = vst [vmem:[#allocation1] ss:$2 sm:$0xff] %v929
        %v932 = vld.sshfl [vmem:[#allocation1] sm:$0xff pattern:$0x75643120]
        %v934 = vld.sshfl [vmem:[#allocation1 + $0x8] sm:$0xff pattern:$0x75643120]
        %936 = vrot.lane.b32.xlu0 %v932, 92
        %v937 = vpop.permute.xlu0 %936
        %938 = vrot.lane.b32.xlu0 %v934, 92
        %v939 = vpop.permute.xlu0 %938
        %v940 = vrot.slane %v937, 4
        %v941 = vrot.slane %v939, 4
        %v942 = vsel %vm442, %v940, %v941
        %v943 = vsel %vm599, %v937, %v942
        %946 = vst [vmem:[#allocation4 + $0x24] sm:$0x33] %v943
        %947 = vst.msk [vmem:[#allocation4 + $0x2c] sm:$0x3] %vm415, %v939
        %v948 = vld [vmem:[#allocation3] sm:$0x3f]
        %s950 = scalar_lea.vmem [#allocation1], 1
        %951 = vst [vmem:[%s950] ss:$2 sm:$0xff] %v948
        %v952 = vld.sshfl [vmem:[#allocation1] sm:$0xff pattern:$0x75643120]
        %v954 = vld.sshfl [vmem:[#allocation1 + $0x8] sm:$0xff pattern:$0x75643120]
        %956 = vrot.lane.b32.xlu0 %v952, 91
        %v957 = vpop.permute.xlu0 %956
        %958 = vrot.lane.b32.xlu0 %v954, 91
        %v959 = vpop.permute.xlu0 %958
        %v960 = vrot.slane %v957, 4
        %v961 = vrot.slane %v959, 4
        %v962 = vsel %vm442, %v960, %v961
        %v963 = vsel %vm631, %v957, %v962
        %966 = vst [vmem:[#allocation4 + $0x24] sm:$0xcc] %v963
        %967 = vst.msk [vmem:[#allocation4 + $0x2c] sm:$0xc] %vm449, %v959
        %v968 = vld [vmem:[#allocation3] sm:$0x3f]
        %970 = vst [vmem:[#allocation1] ss:$2 sm:$0xff] %v968
        %v971 = vld.sshfl [vmem:[#allocation1] sm:$0xff pattern:$0x75643120]
        %v973 = vld.sshfl [vmem:[#allocation1 + $0x8] sm:$0xff pattern:$0x75643120]
        %975 = vrot.lane.b32.xlu0 %v971, 90
        %v976 = vpop.permute.xlu0 %975
        %977 = vrot.lane.b32.xlu0 %v973, 90
        %v978 = vpop.permute.xlu0 %977
        %v979 = vrot.slane %v976, 4
        %v980 = vrot.slane %v978, 4
        %v981 = vsel %vm442, %v979, %v980
        %v982 = vsel %vm661, %v976, %v981
        %985 = vst [vmem:[#allocation4 + $0x30] sm:$0x33] %v982
        %986 = vst.msk [vmem:[#allocation4 + $0x38] sm:$0x3] %vm415, %v978
        %v987 = vld [vmem:[%s2] sm:$0x3]
        %v988 = vld [vmem:[#allocation4] sm:$0xff]
        %v989 = vld [vmem:[#allocation4 + $0x8] sm:$0xf]
        %v990 = vld [vmem:[#allocation4 + $0xc] sm:$0xff]
        %v991 = vld [vmem:[#allocation4 + $0x14] sm:$0xf]
        %v992 = vld [vmem:[#allocation4 + $0x18] sm:$0xff]
        %v993 = vld [vmem:[#allocation4 + $0x20] sm:$0xf]
        %v994 = vld [vmem:[#allocation4 + $0x24] sm:$0xff]
        %v995 = vld [vmem:[#allocation4 + $0x2c] sm:$0xf]
        %v996 = vld [vmem:[#allocation4 + $0x30] sm:$0x33]
        %v997 = vld [vmem:[#allocation4 + $0x38] sm:$0x3]
        %v998 = vld [vmem:[#allocation2] sm:$0xff]
        %v999 = vld [vmem:[#allocation2 + $0x8] sm:$0xf]
        %1001 = vset.pattern.permute.xlu0 0
        %1002 = vperm.xlu0 %1001, %v397
        %v1003 = vpop.permute.xlu0 %1002
        %v1015 = vunpack.c.l.b16 %v988
        %v1016 = vunpack.c.h.b16 %v988
        %v1017 = vunpack.c.l.b16 %v989
        %v1018 = vunpack.c.l.b16 %v990
        %v1019 = vunpack.c.h.b16 %v990
        %v1020 = vunpack.c.l.b16 %v991
        %v1021 = vunpack.c.l.b16 %v992
        %v1022 = vunpack.c.h.b16 %v992
        %v1023 = vunpack.c.l.b16 %v993
        %v1024 = vunpack.c.l.b16 %v994
        %v1025 = vunpack.c.h.b16 %v994
        %v1026 = vunpack.c.l.b16 %v995
        %v1027 = vunpack.c.l.b16 %v996
        %v1028 = vunpack.c.h.b16 %v996
        %v1029 = vunpack.c.l.b16 %v997
        %v1030 = vpack.c.b16 %v1018, %v1015
        %v1031 = vpack.c.b16 %v1019, %v1016
        %v1032 = vpack.c.b16 %v1020, %v1017
        %v1033 = vpack.c.b16 %v1024, %v1021
        %v1034 = vpack.c.b16 %v1025, %v1022
        %v1035 = vpack.c.b16 %v1026, %v1023
        %v1036 = vpack.c.b16 %v1027, %v1027
        %v1037 = vpack.c.b16 %v1028, %v1028
        %v1038 = vpack.c.b16 %v1029, %v1029
        %v1046 = vsel %vm723, %v987, 0
        %v1049 = vsel %vm727, %v1036, 0
        %v1052 = vsel %vm727, %v1037, 0
        %v1055 = vsel %vm727, %v1038, 0
        %1057 = vmatpush.bf16.msra.mxu0 0
        %1058 = vmatpush.bf16.msra.mxu0 0
        %1059 = vmatpush.bf16.msra.mxu0 0
        %1060 = vmatpush.bf16.msra.mxu0 0
        %1061 = vmatpush.bf16.msra.mxu0 0
        %1062 = vmatpush.bf16.msra.mxu0 %v1049
        %1063 = vmatpush.bf16.msra.mxu0 %v1033
        %1064 = vmatpush.bf16.msra.mxu0 %v1030
        %1065 = vmatmul.bf16.gmra.mxu0 %v1046
        %v1066 = vpop.f32.mrf.mxu0
        %v1067 = vadd.f32 %v1003, %v1066
        %v1068 = vpop.f32.mrf.mxu0
        %1069 = vdwg.mxu0
        %1070 = vmatpush.bf16.msra.mxu0 0
        %1071 = vmatpush.bf16.msra.mxu0 0
        %1072 = vmatpush.bf16.msra.mxu0 0
        %1073 = vmatpush.bf16.msra.mxu0 0
        %1074 = vmatpush.bf16.msra.mxu0 0
        %1075 = vmatpush.bf16.msra.mxu0 %v1052
        %1076 = vmatpush.bf16.msra.mxu0 %v1034
        %1077 = vmatpush.bf16.msra.mxu0 %v1031
        %1078 = vmatmul.bf16.gmra.mxu0 %v1046
        %v1079 = vpop.f32.mrf.mxu0
        %v1080 = vadd.f32 %v1003, %v1079
        %v1081 = vpop.f32.mrf.mxu0
        %1082 = vdwg.mxu0
        %1083 = vmatpush.bf16.msra.mxu0 0
        %1084 = vmatpush.bf16.msra.mxu0 0
        %1085 = vmatpush.bf16.msra.mxu0 0
        %1086 = vmatpush.bf16.msra.mxu0 0
        %1087 = vmatpush.bf16.msra.mxu0 0
        %1088 = vmatpush.bf16.msra.mxu0 %v1055
        %1089 = vmatpush.bf16.msra.mxu0 %v1035
        %1090 = vmatpush.bf16.msra.mxu0 %v1032
        %1091 = vmatmul.bf16.gmra.mxu0 %v1046
        %v1092 = vpop.f32.mrf.mxu0
        %v1093 = vadd.f32 %v1003, %v1092
        %v1094 = vpop.f32.mrf.mxu0
        %1095 = vdwg.mxu0
        %1098 = vst [vmem:[#allocation1] ss:$2 sm:$0xff] %v998
        %s1099 = scalar_lea.vmem [#allocation1], 16
        %1100 = vst [vmem:[%s1099] ss:$2 sm:$0xff] %v999
        %v1101 = vld.sshfl [vmem:[#allocation1] sm:$0xff pattern:$0x75316420]
        %v1102 = vld.sshfl [vmem:[#allocation1 + $0x8] sm:$0xff pattern:$0x75316420]
        %v1103 = vld.sshfl [vmem:[#allocation1 + $0x10] sm:$0xff pattern:$0x75316420]
        %1104 = vrot.lane.b32.xlu0 %v1101, 109
        %v1105 = vpop.permute.xlu0 %1104
        %1106 = vrot.lane.b32.xlu0 %v1102, 109
        %v1107 = vpop.permute.xlu0 %1106
        %1108 = vrot.lane.b32.xlu0 %v1103, 109
        %v1109 = vpop.permute.xlu0 %1108
        %vm1110 = vcmask 891904
        %v1111 = vsel %vm1110, %v1105, %v1107
        %v1112 = vsel %vm1110, %v1107, %v1109
        %v1116 = vadd.f32 %v1067, %v1111
        %v1117 = vadd.f32 %v1080, %v1112
        %v1118 = vadd.f32 %v1093, %v1109
        %v1119 = vmax.f32 %v1116, 0.0
        %v1120 = vmax.f32 %v1117, 0.0
        %v1121 = vmax.f32 %v1118, 0.0
        %vm1122 = vcmask 125952
        %1123 = vst.msk [vmem:[%s269] sm:$0xf] %vm1122, %v1119
        %1125 = vrot.lane.b32.xlu0 %v1119, 126
        %v1126 = vpop.permute.xlu0 %1125
        %vm1128 = vcmask 257152
        %1129 = vst.msk [vmem:[%s269] sm:$0xf] %vm1128, %v1126
        %1130 = vrot.lane.b32.xlu0 %v1119, 124
        %v1131 = vpop.permute.xlu0 %1130
        %vm1133 = vcmask 388352
        %1134 = vst.msk [vmem:[%s269] sm:$0xf] %vm1133, %v1131
        %1135 = vrot.lane.b32.xlu0 %v1119, 122
        %v1136 = vpop.permute.xlu0 %1135
        %vm1138 = vcmask 519552
        %1139 = vst.msk [vmem:[%s269] sm:$0xf] %vm1138, %v1136
        %1140 = vrot.lane.b32.xlu0 %v1119, 120
        %v1141 = vpop.permute.xlu0 %1140
        %vm1143 = vcmask 650752
        %1144 = vst.msk [vmem:[%s269] sm:$0xf] %vm1143, %v1141
        %1145 = vrot.lane.b32.xlu0 %v1119, 118
        %v1146 = vpop.permute.xlu0 %1145
        %vm1148 = vcmask 781952
        %1149 = vst.msk [vmem:[%s269] sm:$0xf] %vm1148, %v1146
        %1150 = vrot.lane.b32.xlu0 %v1119, 116
        %v1151 = vpop.permute.xlu0 %1150
        %vm1153 = vcmask 913152
        %1154 = vst.msk [vmem:[%s269] sm:$0xf] %vm1153, %v1151
        %v1156 = vrot.slane %v1120, 4
        %v1157 = vsel %vm808, %v1119, %v1156
        %1158 = vrot.lane.b32.xlu0 %v1157, 114
        %v1159 = vpop.permute.xlu0 %1158
        %v1160 = vrot.slane %v1159, 4
        %vm1161 = vcmask 932864
        %v1162 = vsel %vm1161, %v1159, %v1160
        %vm1164 = vcmask 1044352
        %1165 = vst.msk [vmem:[%s269] sm:$0xf] %vm1164, %v1162
        %1166 = vrot.lane.b32.xlu0 %v1120, 112
        %v1167 = vpop.permute.xlu0 %1166
        %1169 = vst.msk [vmem:[%s269 + $0x4] sm:$0xf] %vm1122, %v1167
        %1170 = vrot.lane.b32.xlu0 %v1120, 110
        %v1171 = vpop.permute.xlu0 %1170
        %1173 = vst.msk [vmem:[%s269 + $0x4] sm:$0xf] %vm1128, %v1171
        %1174 = vrot.lane.b32.xlu0 %v1120, 108
        %v1175 = vpop.permute.xlu0 %1174
        %1177 = vst.msk [vmem:[%s269 + $0x4] sm:$0xf] %vm1133, %v1175
        %1178 = vrot.lane.b32.xlu0 %v1120, 106
        %v1179 = vpop.permute.xlu0 %1178
        %1181 = vst.msk [vmem:[%s269 + $0x4] sm:$0xf] %vm1138, %v1179
        %1182 = vrot.lane.b32.xlu0 %v1120, 104
        %v1183 = vpop.permute.xlu0 %1182
        %1185 = vst.msk [vmem:[%s269 + $0x4] sm:$0xf] %vm1143, %v1183
        %1186 = vrot.lane.b32.xlu0 %v1120, 102
        %v1187 = vpop.permute.xlu0 %1186
        %1189 = vst.msk [vmem:[%s269 + $0x4] sm:$0xf] %vm1148, %v1187
        %v1191 = vrot.slane %v1121, 4
        %v1192 = vsel %vm808, %v1120, %v1191
        %1193 = vrot.lane.b32.xlu0 %v1192, 100
        %v1194 = vpop.permute.xlu0 %1193
        %v1195 = vrot.slane %v1194, 4
        %vm1196 = vcmask 818176
        %v1197 = vsel %vm1196, %v1194, %v1195
        %1199 = vst.msk [vmem:[%s269 + $0x4] sm:$0xf] %vm1153, %v1197
        %1200 = vrot.lane.b32.xlu0 %v1121, 98
        %v1201 = vpop.permute.xlu0 %1200
        %1203 = vst.msk [vmem:[%s269 + $0x4] sm:$0xf] %vm1164, %v1201
        %s1204 = sand.u32 %s162, 1
        %s1205 = scalar_lea.sflag [#allocation7], %s1204
        %s1206 = sand.u32 %s162, 1
        %s1207 = smul.addr %s1206, 8
        %s1208 = scalar_lea.vmem [#allocation8], %s1207
        // Predicated region
        $region49: #{tpu_custom_call.1} parent=43 // pred_check
          %p1209 = pneg %p172
        $region50: #{tpu_custom_call.1} parent=43 // pred_check_branch
          %1211 = sbr.rel (%p1209) target = $region52
        $region51: #{tpu_custom_call.1} parent=43 // pred_region
          %1213 = vsyncadd %s1205, 0
          %s1214 = smul.addr %s23, 2
          %s1215 = smul.addr %s1214, 4
          %s1216 = scalar_lea.hbm %s6, %s1215
          %s1218 = sshll.u32 %s1208, 4
          %s1219 = int_to_ptr.vmem [resolvable:$true] %s1218
          %s1220 = sshll.u32 %s1216, 4
          %s1221 = int_to_ptr.hbm [resolvable:$true] %s1220
          %1223 = dma.vmem_to_hbm [thread:$0]  %s1219, 128, %s1221, %s1205
        $region52: #{tpu_custom_call.1} parent=43 // pred_fallthru
          _
      $region44: #{tpu_custom_call.1} parent=5 // pred_fallthru
        _
      %p1224 = scmp.le.s32.totalorder 2, %s18
      // Predicated region
      $region53: #{tpu_custom_call.1} parent=5 // pred_check
        %p1225 = pneg %p1224
      $region54: #{tpu_custom_call.1} parent=5 // pred_check_branch
        %1227 = sbr.rel (%p1225) target = $region56
      $region55: #{tpu_custom_call.1} parent=5 // pred_region
        %s1228 = ssub.s32 %s18, 2
        // Predicated region
        $region57: #{tpu_custom_call.1} parent=55 // pred_check
          %p1229 = pneg %p178
        $region58: #{tpu_custom_call.1} parent=55 // pred_check_branch
          %1231 = sbr.rel (%p1229) target = $region60
        $region59: #{tpu_custom_call.1} parent=55 // pred_region
          %s1232 = sand.u32 %s163, 1
          %s1233 = scalar_lea.sflag [#allocation7], %s1232
          %s1234 = sand.u32 %s163, 1
          %s1235 = smul.addr %s1234, 8
          %s1236 = scalar_lea.vmem [#allocation8], %s1235
          %1238 = dma.done %s1233, 128
        $region60: #{tpu_custom_call.1} parent=55 // pred_fallthru
          _
      $region56: #{tpu_custom_call.1} parent=5 // pred_fallthru
        _
    $region6: #{tpu_custom_call.1} parent=1 // loop_footer
      %s22 = sadd.s32 1, %s18
    $region7: #{tpu_custom_call.1} parent=1 // loop_footer_branch
      %17 = sbr.rel target = $region3
    $region8: #{tpu_custom_call.1} parent=1 // loop_exit
      _
    %1239 = vsyncpa [#allocation6], 1
    %s1240 = scalar_lea.sflag [#allocation6], 1
    %1241 = vsyncpa %s1240, 1
    %1242 = vsyncpa [#allocation7], 1
    %s1243 = scalar_lea.sflag [#allocation7], 1
    %1244 = vsyncpa %s1243, 1

</llo_original>
